<compile_context>
chip_gen: v6e
topology: v6e:2x2x1
jax: 0.10.0
libtpu: 0.0.40
codegen_flags: <defaults>
</compile_context>

<pallas_src>
import functools

import jax
import jax.numpy as jnp
from jax.experimental import pallas as pl
from jax.experimental.pallas import tpu as pltpu

KERNEL_SET = (2, 3, 6, 7)
MAX_K = max(KERNEL_SET)          # 7
CGP_ALPHA = 1.0
CGP_STEP = 0.25
CGP_NSTEPS = 4                   # integrates t in [0, 1]
NEW_DILATION = 1                 # STBlock.__init__ sets self.new_dilation = 1


# ----------------------------------------------------------------------------
# Pallas kernel: whole STBlock forward for `bb` batch elements per grid step.
# ----------------------------------------------------------------------------
def _st_block_kernel(x_ref, winc_ref, binc_ref, wmlp_ref, bout_ref, pbd_ref,
                     o_ref, *, n_nodes, t_out, dilation, batch_block):
    C2 = winc_ref.shape[0]                 # 2*C (filter & gate stacked)
    C = C2 // 2
    N = n_nodes
    bb = batch_block
    bn = bb * N                            # folded (batch, node) lane group
    M = t_out * bn                         # lane width of the hot matmuls
    T = x_ref.shape[2] // bn
    pad_t = T - t_out                      # left zero-pad length (time steps)

    # --- fused dilated-inception: one (2C, 7C) x (7C, M) bf16 matmul ---------
    # X7 rows are (tap, c_in); each tap is a lane-contiguous shifted slice.
    taps = [x_ref[0, :, tau * dilation * bn: tau * dilation * bn + M]
            for tau in range(MAX_K)]                            # each (C, M) bf16
    x7 = jnp.concatenate(taps, axis=0)                          # (7C, M) bf16

    z = jnp.dot(winc_ref[...], x7, preferred_element_type=jnp.float32)
    z = z + binc_ref[...]                                       # (2C, M) f32

    filt = jnp.tanh(z[:C])
    gate = jax.nn.sigmoid(z[C:])
    h0 = filt * gate                                            # (C, M) f32
    # TODO(synk): F.dropout(x, p=0.3) runs with training=True in the reference
    # (stochastic zeroing + 1/(1-p) rescale); omitted (identity) for determinism.

    # --- fused 1x1 convs of both CGP blocks (channel mix commutes with the
    # node propagation, so it is applied first on the wide lane layout) -------
    g = jnp.dot(wmlp_ref[...], h0.astype(jnp.bfloat16),
                preferred_element_type=jnp.float32)             # (2C, M) f32

    # --- graph propagation: 4 Euler steps pre-folded into (P^4)^T, expanded
    # to a per-time block-diagonal I_bb ⊗ (P^4)^T in the wrapper --------------
    p1t = pbd_ref[0]                                            # (bn, bn) f32
    p2t = pbd_ref[1]                                            # (bn, bn) f32
    bias = jnp.broadcast_to(bout_ref[...], (C, bn))             # hoisted once

    # Direct slice stores into the output block (no concatenate).
    if pad_t > 0:                                               # F.pad left zeros
        o_ref[0, :, : pad_t * bn] = jnp.zeros((C, pad_t * bn), o_ref.dtype)
    for t in range(t_out):                                      # static unroll
        col = t * bn
        y = (jnp.dot(g[:C, col:col + bn], p1t,
                     preferred_element_type=jnp.float32)
             + jnp.dot(g[C:, col:col + bn], p2t,
                       preferred_element_type=jnp.float32)
             + bias)                                            # (C, bn) f32
        ocol = (pad_t + t) * bn
        o_ref[0, :, ocol:ocol + bn] = y.astype(o_ref.dtype)


# ----------------------------------------------------------------------------
# Wrapper: layout plumbing, weight fusion, propagator precompute, pallas_call.
# ----------------------------------------------------------------------------
def _pick_batch_block(batch, n_nodes, requested=None, max_bb=8, lane_target=256):
    if requested is not None:
        assert batch % requested == 0
        return requested
    # Largest divisor of `batch` that keeps the block-diag propagator small.
    limit = min(batch, max_bb, max(1, lane_target // n_nodes))
    bb = 1
    for cand in range(1, limit + 1):
        if batch % cand == 0:
            bb = cand
    return bb


def st_block_forward(x, adj, params, *, receptive_field, dilation=NEW_DILATION,
                     batch_block=None):
    """x: (B, C, N, T_in) torch NCHW layout, adj: (N, N). Returns (B, C, N, RF)."""
    w_inc, b_inc, w_mlp, b_mlp = params
    B, C, N, T_in = x.shape
    assert T_in >= receptive_field
    T = receptive_field
    x = x[..., -T:]                                   # x[..., -intermediate_seq_len:]
    t_out = T - (MAX_K - 1) * dilation
    assert t_out > 0

    bb = _pick_batch_block(B, N, batch_block)
    nblk = B // bb
    bn = bb * N

    # (B,C,N,T) -> (nblk, C, T*bb*N); lane order (time, batch, node), nodes fastest.
    xs = jnp.transpose(x, (0, 1, 3, 2)).reshape(nblk, bb, C, T, N)
    xs = jnp.transpose(xs, (0, 2, 3, 1, 4)).reshape(nblk, C, T * bn)
    xs = xs.astype(jnp.bfloat16)                      # bf16 MXU operand, half the DMA

    # Fused inception weight: rows (inception, c_out), cols (tap, c_in).
    w_inc_f = jnp.transpose(w_inc, (0, 2, 1, 3)).reshape(2 * C, MAX_K * C)
    w_inc_f = w_inc_f.astype(jnp.bfloat16)
    b_inc_f = b_inc.reshape(2 * C, 1).astype(jnp.float32)

    # Fused CGP 1x1 convs: rows (gconv, c_out), cols c_in.  Biases just add up.
    w_mlp_f = w_mlp.reshape(2 * C, C).astype(jnp.bfloat16)
    b_out = (b_mlp[0] + b_mlp[1]).astype(jnp.float32)           # (C, 1)

    # Collapse the CGP Euler loop: h <- ((1-β)I + β A_hat) h, NSTEPS times.
    def norm(a):
        a = a + jnp.eye(N, dtype=a.dtype)
        dis = jax.lax.rsqrt(jnp.sum(a, axis=1))
        return a * dis[:, None] * dis[None, :]

    def propagator(a):
        beta = CGP_STEP * CGP_ALPHA
        p = (1.0 - beta) * jnp.eye(N, dtype=jnp.float32) + beta * norm(
            a).astype(jnp.float32)
        p_pow = jnp.eye(N, dtype=jnp.float32)
        for _ in range(CGP_NSTEPS):
            p_pow = p_pow @ p
        return p_pow.T                                 # transposed: h_row @ P^T

    # Per-time-step block-diagonal propagators (I_bb ⊗ P^T), shape (2, bn, bn).
    eye_bb = jnp.eye(bb, dtype=jnp.float32)
    p_bd = jnp.stack([jnp.kron(eye_bb, propagator(adj)),
                      jnp.kron(eye_bb, propagator(adj.T))], axis=0)

    kernel = functools.partial(_st_block_kernel, n_nodes=N, t_out=t_out,
                               dilation=dilation, batch_block=bb)

    def full_spec(arr):
        nd = arr.ndim
        return pl.BlockSpec(arr.shape, lambda i, _nd=nd: (0,) * _nd)

    out_flat = pl.pallas_call(
        kernel,
        out_shape=jax.ShapeDtypeStruct((nblk, C, T * bn), x.dtype),
        grid_spec=pltpu.PrefetchScalarGridSpec(
            num_scalar_prefetch=0,
            grid=(nblk,),
            in_specs=[
                pl.BlockSpec((1, C, T * bn), lambda i: (i, 0, 0)),
                full_spec(w_inc_f),
                full_spec(b_inc_f),
                full_spec(w_mlp_f),
                full_spec(b_out),
                full_spec(p_bd),
            ],
            out_specs=pl.BlockSpec((1, C, T * bn), lambda i: (i, 0, 0)),
        ),
        compiler_params=pltpu.CompilerParams(
            dimension_semantics=("parallel",),
            vmem_limit_bytes=32 * 1024 * 1024),
    )(xs, w_inc_f, b_inc_f, w_mlp_f, b_out, p_bd)

    # (nblk, C, T*bb*N) -> (B, C, N, T) back to torch NCHW layout.
    out = out_flat.reshape(nblk, C, T, bb, N)
    return jnp.transpose(out, (0, 3, 1, 4, 2)).reshape(B, C, N, T)


# ----------------------------------------------------------------------------
# Deterministic parameter construction (shapes from the module __init__).
# ----------------------------------------------------------------------------
def init_params(key, hidden_dim):
    C = hidden_dim
    assert C % len(KERNEL_SET) == 0
    cq = C // len(KERNEL_SET)
    keys = iter(jax.random.split(key, 2 * len(KERNEL_SET) * 2 + 4))

    # Packed dilated-inception weights: (2 inceptions, 7 taps, C_out, C_in).
    w_inc = jnp.zeros((2, MAX_K, C, C), jnp.float32)
    b_inc = jnp.zeros((2, C, 1), jnp.float32)
    for i in range(2):                                  # inception_1, inception_2
        for bidx, k in enumerate(KERNEL_SET):
            bound = (1.0 / (C * k)) ** 0.5
            w = jax.random.uniform(next(keys), (cq, C, k), jnp.float32, -bound, bound)
            b = jax.random.uniform(next(keys), (cq,), jnp.float32, -bound, bound)
            # right-align the (1,k) kernel inside the padded 7-tap kernel
            w_inc = w_inc.at[i, MAX_K - k:, bidx * cq:(bidx + 1) * cq, :].set(
                jnp.transpose(w, (2, 0, 1)))
            b_inc = b_inc.at[i, bidx * cq:(bidx + 1) * cq, 0].set(b)

    # CGPBlock 1x1 conv (c_in -> c_out) weights for gconv1 / gconv2.
    w_mlp = jnp.zeros((2, C, C), jnp.float32)
    b_mlp = jnp.zeros((2, C, 1), jnp.float32)
    for j in range(2):
        bound = (1.0 / C) ** 0.5
        w_mlp = w_mlp.at[j].set(
            jax.random.uniform(next(keys), (C, C), jnp.float32, -bound, bound))
        b_mlp = b_mlp.at[j, :, 0].set(
            jax.random.uniform(next(keys), (C,), jnp.float32, -bound, bound))
    return w_inc, b_inc, w_mlp, b_mlp


# ----------------------------------------------------------------------------
# Pure-JAX reference (mirrors the torch forward, NCHW layout, f32 HIGHEST).
# ----------------------------------------------------------------------------
def st_block_reference(x, adj, params, *, receptive_field, dilation=NEW_DILATION):
    w_inc, b_inc, w_mlp, b_mlp = params
    B, C, N, T_in = x.shape
    x = x[..., -receptive_field:]
    T = receptive_field
    t_out = T - (MAX_K - 1) * dilation
    hp = jax.lax.Precision.HIGHEST

    def inception(i):
        acc = jnp.zeros((B, C, N, t_out), jnp.float32)
        for tau in range(MAX_K):
            xs = x[..., tau * dilation: tau * dilation + t_out]
            acc = acc + jnp.einsum('oc,bcnt->bont', w_inc[i, tau], xs, precision=hp)
        return acc + b_inc[i][None, :, :, None]

    h0 = jnp.tanh(inception(0)) * jax.nn.sigmoid(inception(1))

    def norm(a):
        a = a + jnp.eye(N, dtype=a.dtype)
        dis = jax.lax.rsqrt(jnp.sum(a, axis=1))
        return a * dis[:, None] * dis[None, :]

    def cgp(j, a):
        a_hat = norm(a)
        h = h0
        for _ in range(CGP_NSTEPS):
            ax = jnp.einsum('vw,bcwt->bcvt', a_hat, h, precision=hp)
            h = h + CGP_STEP * CGP_ALPHA * (ax - h)
        return (jnp.einsum('oc,bcnt->bont', w_mlp[j], h, precision=hp)
                + b_mlp[j][None, :, :, None])

    y = cgp(0, adj) + cgp(1, adj.T)
    return jnp.pad(y, ((0, 0), (0, 0), (0, 0), (receptive_field - t_out, 0)))


if __name__ == "__main__":
    key = jax.random.PRNGKey(0)
    B, C, N, T_in = 2, 32, 16, 16            # batch, hidden_dim, nodes, seq
    receptive_field = 13

    k_x, k_adj, k_p = jax.random.split(key, 3)
    x = jax.random.normal(k_x, (B, C, N, T_in), jnp.float32)
    adj = jax.nn.softmax(jax.random.normal(k_adj, (N, N), jnp.float32), axis=-1)
    params = init_params(k_p, C)

    out = st_block_forward(x, adj, params, receptive_field=receptive_field)
    out = jax.block_until_ready(out)
    assert out.shape == (B, C, N, receptive_field)

    ref = st_block_reference(x, adj, params, receptive_field=receptive_field)
    err = float(jnp.max(jnp.abs(out - ref)))
    assert err < 1e-2, f"max abs err too large: {err}"
    print("KERNEL_OK")
</pallas_src>

<mosaic_0001>
module attributes {stable_mosaic.version = 11 : i64} {
  func.func @_st_block_kernel(%arg0: i32, %arg1: memref<1x32x416xbf16, #tpu.memory_space<vmem>>, %arg2: memref<64x224xbf16, #tpu.memory_space<vmem>>, %arg3: memref<64x1xf32, #tpu.memory_space<vmem>>, %arg4: memref<64x32xbf16, #tpu.memory_space<vmem>>, %arg5: memref<32x1xf32, #tpu.memory_space<vmem>>, %arg6: memref<2x32x32xf32, #tpu.memory_space<vmem>>, %arg7: memref<1x32x416xf32, #tpu.memory_space<vmem>>) attributes {dimension_semantics = [#tpu.dimension_semantics<parallel>], iteration_bounds = array<i64: 1>, scalar_prefetch = 0 : i64, scratch_operands = 0 : i64, tpu.core_type = #tpu.core_type<tc>, window_params = [{transform_indices = @transform_0, window_bounds = array<i64: 1, 32, 416>}, {pipeline_mode = #tpu.pipeline_mode<synchronous>, transform_indices = @transform_1, window_bounds = array<i64: 64, 224>}, {pipeline_mode = #tpu.pipeline_mode<synchronous>, transform_indices = @transform_2, window_bounds = array<i64: 64, 1>}, {pipeline_mode = #tpu.pipeline_mode<synchronous>, transform_indices = @transform_3, window_bounds = array<i64: 64, 32>}, {pipeline_mode = #tpu.pipeline_mode<synchronous>, transform_indices = @transform_4, window_bounds = array<i64: 32, 1>}, {pipeline_mode = #tpu.pipeline_mode<synchronous>, transform_indices = @transform_5, window_bounds = array<i64: 2, 32, 32>}, {transform_indices = @transform_6, window_bounds = array<i64: 1, 32, 416>}]} {
    %c0 = arith.constant 0 : index
    %c0_0 = arith.constant 0 : index
    %c0_1 = arith.constant 0 : index
    %0 = vector.load %arg1[%c0, %c0_0, %c0_1] : memref<1x32x416xbf16, #tpu.memory_space<vmem>>, vector<1x32x224xbf16>
    %1 = vector.shape_cast %0 : vector<1x32x224xbf16> to vector<32x224xbf16>
    %c0_2 = arith.constant 0 : index
    %c0_3 = arith.constant 0 : index
    %c32 = arith.constant 32 : index
    %2 = vector.load %arg1[%c0_2, %c0_3, %c32] : memref<1x32x416xbf16, #tpu.memory_space<vmem>>, vector<1x32x224xbf16>
    %3 = vector.shape_cast %2 : vector<1x32x224xbf16> to vector<32x224xbf16>
    %c0_4 = arith.constant 0 : index
    %c0_5 = arith.constant 0 : index
    %c64 = arith.constant 64 : index
    %4 = vector.load %arg1[%c0_4, %c0_5, %c64] : memref<1x32x416xbf16, #tpu.memory_space<vmem>>, vector<1x32x224xbf16>
    %5 = vector.shape_cast %4 : vector<1x32x224xbf16> to vector<32x224xbf16>
    %c0_6 = arith.constant 0 : index
    %c0_7 = arith.constant 0 : index
    %c96 = arith.constant 96 : index
    %6 = vector.load %arg1[%c0_6, %c0_7, %c96] : memref<1x32x416xbf16, #tpu.memory_space<vmem>>, vector<1x32x224xbf16>
    %7 = vector.shape_cast %6 : vector<1x32x224xbf16> to vector<32x224xbf16>
    %c0_8 = arith.constant 0 : index
    %c0_9 = arith.constant 0 : index
    %c128 = arith.constant 128 : index
    %8 = vector.load %arg1[%c0_8, %c0_9, %c128] : memref<1x32x416xbf16, #tpu.memory_space<vmem>>, vector<1x32x224xbf16>
    %9 = vector.shape_cast %8 : vector<1x32x224xbf16> to vector<32x224xbf16>
    %c0_10 = arith.constant 0 : index
    %c0_11 = arith.constant 0 : index
    %c160 = arith.constant 160 : index
    %10 = vector.load %arg1[%c0_10, %c0_11, %c160] : memref<1x32x416xbf16, #tpu.memory_space<vmem>>, vector<1x32x224xbf16>
    %11 = vector.shape_cast %10 : vector<1x32x224xbf16> to vector<32x224xbf16>
    %c0_12 = arith.constant 0 : index
    %c0_13 = arith.constant 0 : index
    %c192 = arith.constant 192 : index
    %12 = vector.load %arg1[%c0_12, %c0_13, %c192] : memref<1x32x416xbf16, #tpu.memory_space<vmem>>, vector<1x32x224xbf16>
    %13 = vector.shape_cast %12 : vector<1x32x224xbf16> to vector<32x224xbf16>
    %14 = tpu.concatenate %1, %3, %5, %7, %9, %11, %13 in 0 : vector<32x224xbf16>, vector<32x224xbf16>, vector<32x224xbf16>, vector<32x224xbf16>, vector<32x224xbf16>, vector<32x224xbf16>, vector<32x224xbf16> -> vector<224x224xbf16>
    %c0_14 = arith.constant 0 : index
    %c0_15 = arith.constant 0 : index
    %15 = vector.load %arg2[%c0_14, %c0_15] : memref<64x224xbf16, #tpu.memory_space<vmem>>, vector<64x224xbf16>
    %cst = arith.constant dense<0.000000e+00> : vector<64x224xf32>
    %16 = tpu.matmul %15, %14, %cst {dimension_numbers = #tpu.dot_dimension_numbers<[1], [0], [0], [1], [0, 0, 1, 1], [], []>} : vector<64x224xbf16>, vector<224x224xbf16>, vector<64x224xf32> -> vector<64x224xf32>
    %c0_16 = arith.constant 0 : index
    %c0_17 = arith.constant 0 : index
    %17 = vector.load %arg3[%c0_16, %c0_17] : memref<64x1xf32, #tpu.memory_space<vmem>>, vector<64x1xf32>
    %18 = vector.broadcast %17 : vector<64x1xf32> to vector<64x224xf32>
    %19 = arith.addf %16, %18 : vector<64x224xf32>
    %20 = vector.extract_strided_slice %19 {offsets = [0, 0], sizes = [32, 224], strides = [1, 1]} : vector<64x224xf32> to vector<32x224xf32>
    %21 = math.tanh %20 : vector<32x224xf32>
    %22 = vector.extract_strided_slice %19 {offsets = [32, 0], sizes = [32, 224], strides = [1, 1]} : vector<64x224xf32> to vector<32x224xf32>
    %23 = arith.negf %22 : vector<32x224xf32>
    %24 = math.exp %23 : vector<32x224xf32>
    %cst_18 = arith.constant 1.000000e+00 : f32
    %25 = vector.broadcast %cst_18 : f32 to vector<32x224xf32>
    %26 = arith.addf %25, %24 : vector<32x224xf32>
    %27 = arith.divf %25, %26 : vector<32x224xf32>
    %28 = arith.mulf %21, %27 : vector<32x224xf32>
    %c0_19 = arith.constant 0 : index
    %c0_20 = arith.constant 0 : index
    %29 = vector.load %arg4[%c0_19, %c0_20] : memref<64x32xbf16, #tpu.memory_space<vmem>>, vector<64x32xbf16>
    %30 = arith.truncf %28 : vector<32x224xf32> to vector<32x224xbf16>
    %cst_21 = arith.constant dense<0.000000e+00> : vector<64x224xf32>
    %31 = tpu.matmul %29, %30, %cst_21 {dimension_numbers = #tpu.dot_dimension_numbers<[1], [0], [0], [1], [0, 0, 1, 1], [], []>} : vector<64x32xbf16>, vector<32x224xbf16>, vector<64x224xf32> -> vector<64x224xf32>
    %c0_22 = arith.constant 0 : index
    %c0_23 = arith.constant 0 : index
    %c0_24 = arith.constant 0 : index
    %32 = vector.load %arg6[%c0_22, %c0_23, %c0_24] : memref<2x32x32xf32, #tpu.memory_space<vmem>>, vector<1x32x32xf32>
    %33 = vector.shape_cast %32 : vector<1x32x32xf32> to vector<32x32xf32>
    %c1 = arith.constant 1 : index
    %c0_25 = arith.constant 0 : index
    %c0_26 = arith.constant 0 : index
    %34 = vector.load %arg6[%c1, %c0_25, %c0_26] : memref<2x32x32xf32, #tpu.memory_space<vmem>>, vector<1x32x32xf32>
    %35 = vector.shape_cast %34 : vector<1x32x32xf32> to vector<32x32xf32>
    %c0_27 = arith.constant 0 : index
    %c0_28 = arith.constant 0 : index
    %36 = vector.load %arg5[%c0_27, %c0_28] : memref<32x1xf32, #tpu.memory_space<vmem>>, vector<32x1xf32>
    %37 = vector.shape_cast %36 : vector<32x1xf32> to vector<32x1xf32>
    %38 = vector.broadcast %37 : vector<32x1xf32> to vector<32x32xf32>
    %cst_29 = arith.constant 0.000000e+00 : f32
    %39 = vector.broadcast %cst_29 : f32 to vector<32x192xf32>
    %c0_30 = arith.constant 0 : index
    %c0_31 = arith.constant 0 : index
    %c0_32 = arith.constant 0 : index
    %40 = vector.load %arg7[%c0_30, %c0_31, %c0_32] : memref<1x32x416xf32, #tpu.memory_space<vmem>>, vector<1x32x192xf32>
    %41 = vector.shape_cast %40 : vector<1x32x192xf32> to vector<32x192xf32>
    %42 = vector.shape_cast %39 : vector<32x192xf32> to vector<1x32x192xf32>
    tpu.vector_store %arg7[%c0_30, %c0_31, %c0_32], %42 {strides = array<i32>} : memref<1x32x416xf32, #tpu.memory_space<vmem>>, vector<1x32x192xf32>,
    %43 = vector.extract_strided_slice %31 {offsets = [0, 0], sizes = [32, 32], strides = [1, 1]} : vector<64x224xf32> to vector<32x32xf32>
    %cst_33 = arith.constant dense<0.000000e+00> : vector<32x32xf32>
    %44 = tpu.matmul %43, %33, %cst_33 {dimension_numbers = #tpu.dot_dimension_numbers<[1], [0], [0], [1], [0, 0, 1, 1], [], []>} : vector<32x32xf32>, vector<32x32xf32>, vector<32x32xf32> -> vector<32x32xf32>
    %45 = vector.extract_strided_slice %31 {offsets = [32, 0], sizes = [32, 32], strides = [1, 1]} : vector<64x224xf32> to vector<32x32xf32>
    %cst_34 = arith.constant dense<0.000000e+00> : vector<32x32xf32>
    %46 = tpu.matmul %45, %35, %cst_34 {dimension_numbers = #tpu.dot_dimension_numbers<[1], [0], [0], [1], [0, 0, 1, 1], [], []>} : vector<32x32xf32>, vector<32x32xf32>, vector<32x32xf32> -> vector<32x32xf32>
    %47 = arith.addf %44, %46 : vector<32x32xf32>
    %48 = arith.addf %47, %38 : vector<32x32xf32>
    %c0_35 = arith.constant 0 : index
    %c0_36 = arith.constant 0 : index
    %c192_37 = arith.constant 192 : index
    %49 = vector.load %arg7[%c0_35, %c0_36, %c192_37] : memref<1x32x416xf32, #tpu.memory_space<vmem>>, vector<1x32x32xf32>
    %50 = vector.shape_cast %49 : vector<1x32x32xf32> to vector<32x32xf32>
    %51 = vector.shape_cast %48 : vector<32x32xf32> to vector<1x32x32xf32>
    tpu.vector_store %arg7[%c0_35, %c0_36, %c192_37], %51 {strides = array<i32>} : memref<1x32x416xf32, #tpu.memory_space<vmem>>, vector<1x32x32xf32>,
    %52 = vector.extract_strided_slice %31 {offsets = [0, 32], sizes = [32, 32], strides = [1, 1]} : vector<64x224xf32> to vector<32x32xf32>
    %cst_38 = arith.constant dense<0.000000e+00> : vector<32x32xf32>
    %53 = tpu.matmul %52, %33, %cst_38 {dimension_numbers = #tpu.dot_dimension_numbers<[1], [0], [0], [1], [0, 0, 1, 1], [], []>} : vector<32x32xf32>, vector<32x32xf32>, vector<32x32xf32> -> vector<32x32xf32>
    %54 = vector.extract_strided_slice %31 {offsets = [32, 32], sizes = [32, 32], strides = [1, 1]} : vector<64x224xf32> to vector<32x32xf32>
    %cst_39 = arith.constant dense<0.000000e+00> : vector<32x32xf32>
    %55 = tpu.matmul %54, %35, %cst_39 {dimension_numbers = #tpu.dot_dimension_numbers<[1], [0], [0], [1], [0, 0, 1, 1], [], []>} : vector<32x32xf32>, vector<32x32xf32>, vector<32x32xf32> -> vector<32x32xf32>
    %56 = arith.addf %53, %55 : vector<32x32xf32>
    %57 = arith.addf %56, %38 : vector<32x32xf32>
    %c0_40 = arith.constant 0 : index
    %c0_41 = arith.constant 0 : index
    %c224 = arith.constant 224 : index
    %58 = vector.load %arg7[%c0_40, %c0_41, %c224] : memref<1x32x416xf32, #tpu.memory_space<vmem>>, vector<1x32x32xf32>
    %59 = vector.shape_cast %58 : vector<1x32x32xf32> to vector<32x32xf32>
    %60 = vector.shape_cast %57 : vector<32x32xf32> to vector<1x32x32xf32>
    tpu.vector_store %arg7[%c0_40, %c0_41, %c224], %60 {strides = array<i32>} : memref<1x32x416xf32, #tpu.memory_space<vmem>>, vector<1x32x32xf32>,
    %61 = vector.extract_strided_slice %31 {offsets = [0, 64], sizes = [32, 32], strides = [1, 1]} : vector<64x224xf32> to vector<32x32xf32>
    %cst_42 = arith.constant dense<0.000000e+00> : vector<32x32xf32>
    %62 = tpu.matmul %61, %33, %cst_42 {dimension_numbers = #tpu.dot_dimension_numbers<[1], [0], [0], [1], [0, 0, 1, 1], [], []>} : vector<32x32xf32>, vector<32x32xf32>, vector<32x32xf32> -> vector<32x32xf32>
    %63 = vector.extract_strided_slice %31 {offsets = [32, 64], sizes = [32, 32], strides = [1, 1]} : vector<64x224xf32> to vector<32x32xf32>
    %cst_43 = arith.constant dense<0.000000e+00> : vector<32x32xf32>
    %64 = tpu.matmul %63, %35, %cst_43 {dimension_numbers = #tpu.dot_dimension_numbers<[1], [0], [0], [1], [0, 0, 1, 1], [], []>} : vector<32x32xf32>, vector<32x32xf32>, vector<32x32xf32> -> vector<32x32xf32>
    %65 = arith.addf %62, %64 : vector<32x32xf32>
    %66 = arith.addf %65, %38 : vector<32x32xf32>
    %c0_44 = arith.constant 0 : index
    %c0_45 = arith.constant 0 : index
    %c256 = arith.constant 256 : index
    %67 = vector.load %arg7[%c0_44, %c0_45, %c256] : memref<1x32x416xf32, #tpu.memory_space<vmem>>, vector<1x32x32xf32>
    %68 = vector.shape_cast %67 : vector<1x32x32xf32> to vector<32x32xf32>
    %69 = vector.shape_cast %66 : vector<32x32xf32> to vector<1x32x32xf32>
    tpu.vector_store %arg7[%c0_44, %c0_45, %c256], %69 {strides = array<i32>} : memref<1x32x416xf32, #tpu.memory_space<vmem>>, vector<1x32x32xf32>,
    %70 = vector.extract_strided_slice %31 {offsets = [0, 96], sizes = [32, 32], strides = [1, 1]} : vector<64x224xf32> to vector<32x32xf32>
    %cst_46 = arith.constant dense<0.000000e+00> : vector<32x32xf32>
    %71 = tpu.matmul %70, %33, %cst_46 {dimension_numbers = #tpu.dot_dimension_numbers<[1], [0], [0], [1], [0, 0, 1, 1], [], []>} : vector<32x32xf32>, vector<32x32xf32>, vector<32x32xf32> -> vector<32x32xf32>
    %72 = vector.extract_strided_slice %31 {offsets = [32, 96], sizes = [32, 32], strides = [1, 1]} : vector<64x224xf32> to vector<32x32xf32>
    %cst_47 = arith.constant dense<0.000000e+00> : vector<32x32xf32>
    %73 = tpu.matmul %72, %35, %cst_47 {dimension_numbers = #tpu.dot_dimension_numbers<[1], [0], [0], [1], [0, 0, 1, 1], [], []>} : vector<32x32xf32>, vector<32x32xf32>, vector<32x32xf32> -> vector<32x32xf32>
    %74 = arith.addf %71, %73 : vector<32x32xf32>
    %75 = arith.addf %74, %38 : vector<32x32xf32>
    %c0_48 = arith.constant 0 : index
    %c0_49 = arith.constant 0 : index
    %c288 = arith.constant 288 : index
    %76 = vector.load %arg7[%c0_48, %c0_49, %c288] : memref<1x32x416xf32, #tpu.memory_space<vmem>>, vector<1x32x32xf32>
    %77 = vector.shape_cast %76 : vector<1x32x32xf32> to vector<32x32xf32>
    %78 = vector.shape_cast %75 : vector<32x32xf32> to vector<1x32x32xf32>
    tpu.vector_store %arg7[%c0_48, %c0_49, %c288], %78 {strides = array<i32>} : memref<1x32x416xf32, #tpu.memory_space<vmem>>, vector<1x32x32xf32>,
    %79 = vector.extract_strided_slice %31 {offsets = [0, 128], sizes = [32, 32], strides = [1, 1]} : vector<64x224xf32> to vector<32x32xf32>
    %cst_50 = arith.constant dense<0.000000e+00> : vector<32x32xf32>
    %80 = tpu.matmul %79, %33, %cst_50 {dimension_numbers = #tpu.dot_dimension_numbers<[1], [0], [0], [1], [0, 0, 1, 1], [], []>} : vector<32x32xf32>, vector<32x32xf32>, vector<32x32xf32> -> vector<32x32xf32>
    %81 = vector.extract_strided_slice %31 {offsets = [32, 128], sizes = [32, 32], strides = [1, 1]} : vector<64x224xf32> to vector<32x32xf32>
    %cst_51 = arith.constant dense<0.000000e+00> : vector<32x32xf32>
    %82 = tpu.matmul %81, %35, %cst_51 {dimension_numbers = #tpu.dot_dimension_numbers<[1], [0], [0], [1], [0, 0, 1, 1], [], []>} : vector<32x32xf32>, vector<32x32xf32>, vector<32x32xf32> -> vector<32x32xf32>
    %83 = arith.addf %80, %82 : vector<32x32xf32>
    %84 = arith.addf %83, %38 : vector<32x32xf32>
    %c0_52 = arith.constant 0 : index
    %c0_53 = arith.constant 0 : index
    %c320 = arith.constant 320 : index
    %85 = vector.load %arg7[%c0_52, %c0_53, %c320] : memref<1x32x416xf32, #tpu.memory_space<vmem>>, vector<1x32x32xf32>
    %86 = vector.shape_cast %85 : vector<1x32x32xf32> to vector<32x32xf32>
    %87 = vector.shape_cast %84 : vector<32x32xf32> to vector<1x32x32xf32>
    tpu.vector_store %arg7[%c0_52, %c0_53, %c320], %87 {strides = array<i32>} : memref<1x32x416xf32, #tpu.memory_space<vmem>>, vector<1x32x32xf32>,
    %88 = vector.extract_strided_slice %31 {offsets = [0, 160], sizes = [32, 32], strides = [1, 1]} : vector<64x224xf32> to vector<32x32xf32>
    %cst_54 = arith.constant dense<0.000000e+00> : vector<32x32xf32>
    %89 = tpu.matmul %88, %33, %cst_54 {dimension_numbers = #tpu.dot_dimension_numbers<[1], [0], [0], [1], [0, 0, 1, 1], [], []>} : vector<32x32xf32>, vector<32x32xf32>, vector<32x32xf32> -> vector<32x32xf32>
    %90 = vector.extract_strided_slice %31 {offsets = [32, 160], sizes = [32, 32], strides = [1, 1]} : vector<64x224xf32> to vector<32x32xf32>
    %cst_55 = arith.constant dense<0.000000e+00> : vector<32x32xf32>
    %91 = tpu.matmul %90, %35, %cst_55 {dimension_numbers = #tpu.dot_dimension_numbers<[1], [0], [0], [1], [0, 0, 1, 1], [], []>} : vector<32x32xf32>, vector<32x32xf32>, vector<32x32xf32> -> vector<32x32xf32>
    %92 = arith.addf %89, %91 : vector<32x32xf32>
    %93 = arith.addf %92, %38 : vector<32x32xf32>
    %c0_56 = arith.constant 0 : index
    %c0_57 = arith.constant 0 : index
    %c352 = arith.constant 352 : index
    %94 = vector.load %arg7[%c0_56, %c0_57, %c352] : memref<1x32x416xf32, #tpu.memory_space<vmem>>, vector<1x32x32xf32>
    %95 = vector.shape_cast %94 : vector<1x32x32xf32> to vector<32x32xf32>
    %96 = vector.shape_cast %93 : vector<32x32xf32> to vector<1x32x32xf32>
    tpu.vector_store %arg7[%c0_56, %c0_57, %c352], %96 {strides = array<i32>} : memref<1x32x416xf32, #tpu.memory_space<vmem>>, vector<1x32x32xf32>,
    %97 = vector.extract_strided_slice %31 {offsets = [0, 192], sizes = [32, 32], strides = [1, 1]} : vector<64x224xf32> to vector<32x32xf32>
    %cst_58 = arith.constant dense<0.000000e+00> : vector<32x32xf32>
    %98 = tpu.matmul %97, %33, %cst_58 {dimension_numbers = #tpu.dot_dimension_numbers<[1], [0], [0], [1], [0, 0, 1, 1], [], []>} : vector<32x32xf32>, vector<32x32xf32>, vector<32x32xf32> -> vector<32x32xf32>
    %99 = vector.extract_strided_slice %31 {offsets = [32, 192], sizes = [32, 32], strides = [1, 1]} : vector<64x224xf32> to vector<32x32xf32>
    %cst_59 = arith.constant dense<0.000000e+00> : vector<32x32xf32>
    %100 = tpu.matmul %99, %35, %cst_59 {dimension_numbers = #tpu.dot_dimension_numbers<[1], [0], [0], [1], [0, 0, 1, 1], [], []>} : vector<32x32xf32>, vector<32x32xf32>, vector<32x32xf32> -> vector<32x32xf32>
    %101 = arith.addf %98, %100 : vector<32x32xf32>
    %102 = arith.addf %101, %38 : vector<32x32xf32>
    %c0_60 = arith.constant 0 : index
    %c0_61 = arith.constant 0 : index
    %c384 = arith.constant 384 : index
    %103 = vector.load %arg7[%c0_60, %c0_61, %c384] : memref<1x32x416xf32, #tpu.memory_space<vmem>>, vector<1x32x32xf32>
    %104 = vector.shape_cast %103 : vector<1x32x32xf32> to vector<32x32xf32>
    %105 = vector.shape_cast %102 : vector<32x32xf32> to vector<1x32x32xf32>
    tpu.vector_store %arg7[%c0_60, %c0_61, %c384], %105 {strides = array<i32>} : memref<1x32x416xf32, #tpu.memory_space<vmem>>, vector<1x32x32xf32>,
    return
  }
  func.func @transform_0(%arg0: i32) -> (i32, i32, i32) {
    %c0_i32 = arith.constant 0 : i32
    %c0_i32_0 = arith.constant 0 : i32
    %c0_i32_1 = arith.constant 0 : i32
    return %arg0, %c0_i32, %c0_i32_0 : i32, i32, i32
  }
  func.func @transform_1(%arg0: i32) -> (i32, i32) {
    %c0_i32 = arith.constant 0 : i32
    %c0_i32_0 = arith.constant 0 : i32
    %c0_i32_1 = arith.constant 0 : i32
    return %c0_i32, %c0_i32_0 : i32, i32
  }
  func.func @transform_2(%arg0: i32) -> (i32, i32) {
    %c0_i32 = arith.constant 0 : i32
    %c0_i32_0 = arith.constant 0 : i32
    %c0_i32_1 = arith.constant 0 : i32
    return %c0_i32, %c0_i32_0 : i32, i32
  }
  func.func @transform_3(%arg0: i32) -> (i32, i32) {
    %c0_i32 = arith.constant 0 : i32
    %c0_i32_0 = arith.constant 0 : i32
    %c0_i32_1 = arith.constant 0 : i32
    return %c0_i32, %c0_i32_0 : i32, i32
  }
  func.func @transform_4(%arg0: i32) -> (i32, i32) {
    %c0_i32 = arith.constant 0 : i32
    %c0_i32_0 = arith.constant 0 : i32
    %c0_i32_1 = arith.constant 0 : i32
    return %c0_i32, %c0_i32_0 : i32, i32
  }
  func.func @transform_5(%arg0: i32) -> (i32, i32, i32) {
    %c0_i32 = arith.constant 0 : i32
    %c0_i32_0 = arith.constant 0 : i32
    %c0_i32_1 = arith.constant 0 : i32
    %c0_i32_2 = arith.constant 0 : i32
    return %c0_i32, %c0_i32_0, %c0_i32_1 : i32, i32, i32
  }
  func.func @transform_6(%arg0: i32) -> (i32, i32, i32) {
    %c0_i32 = arith.constant 0 : i32
    %c0_i32_0 = arith.constant 0 : i32
    %c0_i32_1 = arith.constant 0 : i32
    return %arg0, %c0_i32, %c0_i32_0 : i32, i32, i32
  }
}

</mosaic_0001>

<llo_original>
// kernel: tpu_custom_call.1
$region0: #{tpu_custom_call.1}
  #allocation0 [shape = 'u32[]', space=smem, size = 0x4, offset = 0x4, fixed_abs, tag = 'smem constant byte address 0x4 - core index']
  #allocation1 [shape = 'u32[144,128]{1,0:T(1,128)}', space=vmem, size = 0x12000, scoped, tag = 'internal scratch']
  %s0 = inlined_call_operand.vmem [shape: bf16[1,32,416], index: 0, kind: input, shape index: {}]
  %s1 = inlined_call_operand.vmem [shape: bf16[64,224], index: 1, kind: input, shape index: {}]
  %s2 = inlined_call_operand.vmem [shape: f32[64,1], index: 2, kind: input, shape index: {}]
  %s3 = inlined_call_operand.vmem [shape: bf16[64,32], index: 3, kind: input, shape index: {}]
  %s4 = inlined_call_operand.vmem [shape: f32[32,1], index: 4, kind: input, shape index: {}]
  %s5 = inlined_call_operand.hbm [shape: f32[2,32,32], index: 5, kind: input, shape index: {}]
  %s6 = inlined_call_operand.hbm [shape: f32[1,32,416], index: 6, kind: output, shape index: {}]
  %s7 = sld [smem:[#allocation0]]
  $region38: #{tpu_custom_call.1} parent=0
    _
  %s9 = ssub.s32 1, %s7
  %s10 = scalar_select 0, %s9, %s7
  $region1: #{tpu_custom_call.1} parent=0
    #allocation2 [shape = 'u8[32768]{0}', space=vmem, size = 0x8000, scoped, tag = 'input window, operand 5, single buffered']
    #allocation3 [shape = 's32[1]{0}', space=sflag, size = 0x4, scoped, tag = 'scoped memory for tpu_custom_call.1']
    #allocation4 [shape = 's32[1]{0}', space=sflag, size = 0x4, scoped, tag = 'scoped memory for tpu_custom_call.1']
    #allocation5 [shape = 'u8[65536]{0}', space=vmem, size = 0x10000, scoped, tag = 'output window, operand 0, single buffered']
    %11 = vsyncpa [#allocation3], 0
    %12 = vsyncpa [#allocation4], 0
    // Predicated region
    $region2: #{tpu_custom_call.1} parent=1 // pred_check
      _
    $region3: #{tpu_custom_call.1} parent=1 // pred_check_branch
      %14 = sbr.rel (0) target = $region5
    $region4: #{tpu_custom_call.1} parent=1 // pred_region
      _
    $region5: #{tpu_custom_call.1} parent=1 // pred_fallthru
      _
    // Predicated region
    $region6: #{tpu_custom_call.1} parent=1 // pred_check
      _
    $region7: #{tpu_custom_call.1} parent=1 // pred_check_branch
      %16 = sbr.rel (0) target = $region9
    $region8: #{tpu_custom_call.1} parent=1 // pred_region
      _
    $region9: #{tpu_custom_call.1} parent=1 // pred_fallthru
      _
    // Predicated region
    $region10: #{tpu_custom_call.1} parent=1 // pred_check
      _
    $region11: #{tpu_custom_call.1} parent=1 // pred_check_branch
      %18 = sbr.rel (0) target = $region13
    $region12: #{tpu_custom_call.1} parent=1 // pred_region
      _
    $region13: #{tpu_custom_call.1} parent=1 // pred_fallthru
      _
    // Predicated region
    $region14: #{tpu_custom_call.1} parent=1 // pred_check
      _
    $region15: #{tpu_custom_call.1} parent=1 // pred_check_branch
      %20 = sbr.rel (0) target = $region17
    $region16: #{tpu_custom_call.1} parent=1 // pred_region
      _
    $region17: #{tpu_custom_call.1} parent=1 // pred_fallthru
      _
    // Predicated region
    $region18: #{tpu_custom_call.1} parent=1 // pred_check
      _
    $region19: #{tpu_custom_call.1} parent=1 // pred_check_branch
      %22 = sbr.rel (0) target = $region21
    $region20: #{tpu_custom_call.1} parent=1 // pred_region
      _
    $region21: #{tpu_custom_call.1} parent=1 // pred_fallthru
      _
    // Predicated region
    $region22: #{tpu_custom_call.1} parent=1 // pred_check
      _
    $region23: #{tpu_custom_call.1} parent=1 // pred_check_branch
      %24 = sbr.rel (0) target = $region25
    $region24: #{tpu_custom_call.1} parent=1 // pred_region
      %s26 = ssub.s32 1024, 1024
      %27 = vsyncadd [#allocation3], %s26
      %s28 = sshll.u32 [#allocation2], 4
      %s29 = int_to_ptr.vmem [resolvable:$true] %s28
      %34 = dma.hbm_to_vmem [thread:$0]  %s5, 1024, %s29, [#allocation3], 128, 128, 8
    $region25: #{tpu_custom_call.1} parent=1 // pred_fallthru
      _
    // Predicated region
    $region26: #{tpu_custom_call.1} parent=1 // pred_check
      _
    $region27: #{tpu_custom_call.1} parent=1 // pred_check_branch
      %36 = sbr.rel (0) target = $region29
    $region28: #{tpu_custom_call.1} parent=1 // pred_region
      %37 = dma.done [#allocation3], 1024
    $region29: #{tpu_custom_call.1} parent=1 // pred_fallthru
      _
    %v39 = vld [vmem:[%s0] sm:$0xff]
    %v40 = vld [vmem:[%s0 + $0x10] sm:$0xff]
    %v41 = vld [vmem:[%s0 + $0x20] sm:$0xff]
    %v42 = vld [vmem:[%s0 + $0x30] sm:$0xff]
    %v43 = vld [vmem:[%s0 + $0x8] sm:$0xf]
    %v44 = vld [vmem:[%s0 + $0x18] sm:$0xf]
    %v45 = vld [vmem:[%s0 + $0x28] sm:$0xf]
    %v46 = vld [vmem:[%s0 + $0x38] sm:$0xf]
    %v47 = vld [vmem:[%s0 + $0x4] sm:$0xff]
    %v48 = vld [vmem:[%s0 + $0x14] sm:$0xff]
    %v49 = vld [vmem:[%s0 + $0x24] sm:$0xff]
    %v50 = vld [vmem:[%s0 + $0x34] sm:$0xff]
    %v51 = vld [vmem:[%s0 + $0xc] sm:$0xf]
    %v52 = vld [vmem:[%s0 + $0x1c] sm:$0xf]
    %v53 = vld [vmem:[%s0 + $0x2c] sm:$0xf]
    %v54 = vld [vmem:[%s0 + $0x3c] sm:$0xf]
    %v59 = vunpack.c.l.b16 %v39
    %v60 = vunpack.c.h.b16 %v39
    %v61 = vunpack.c.l.b16 %v40
    %v62 = vunpack.c.h.b16 %v40
    %v63 = vunpack.c.l.b16 %v41
    %v64 = vunpack.c.h.b16 %v41
    %v65 = vunpack.c.l.b16 %v42
    %v66 = vunpack.c.h.b16 %v42
    %v67 = vpack.c.b16 %v61, %v59
    %v68 = vpack.c.b16 %v62, %v60
    %v69 = vpack.c.b16 %v65, %v63
    %v70 = vpack.c.b16 %v66, %v64
    %75 = vrot.lane.b32.xlu0 %v67, 96
    %v76 = vpop.permute.xlu0 %75
    %77 = vrot.lane.b32.xlu0 %v68, 96
    %v78 = vpop.permute.xlu0 %77
    %79 = vrot.lane.b32.xlu0 %v69, 96
    %v80 = vpop.permute.xlu0 %79
    %81 = vrot.lane.b32.xlu0 %v70, 96
    %v82 = vpop.permute.xlu0 %81
    %vm83 = vcmask 785408
    %v84 = vsel %vm83, %v76, %v78
    %v85 = vsel %vm83, %v80, %v82
    %v94 = vunpack.c.l.b16 %v43
    %v95 = vunpack.c.l.b16 %v44
    %v96 = vunpack.c.l.b16 %v45
    %v97 = vunpack.c.l.b16 %v46
    %v98 = vpack.c.b16 %v95, %v94
    %v99 = vpack.c.b16 %v97, %v96
    %100 = vrot.lane.b32.xlu0 %v67, 64
    %v101 = vpop.permute.xlu0 %100
    %102 = vrot.lane.b32.xlu0 %v68, 64
    %v103 = vpop.permute.xlu0 %102
    %104 = vrot.lane.b32.xlu0 %v98, 64
    %v105 = vpop.permute.xlu0 %104
    %106 = vrot.lane.b32.xlu0 %v69, 64
    %v107 = vpop.permute.xlu0 %106
    %108 = vrot.lane.b32.xlu0 %v70, 64
    %v109 = vpop.permute.xlu0 %108
    %110 = vrot.lane.b32.xlu0 %v99, 64
    %v111 = vpop.permute.xlu0 %110
    %vm112 = vcmask 523264
    %v113 = vsel %vm112, %v101, %v103
    %v114 = vsel %vm112, %v103, %v105
    %v115 = vsel %vm112, %v107, %v109
    %v116 = vsel %vm112, %v109, %v111
    %121 = vrot.lane.b32.xlu0 %v67, 32
    %v122 = vpop.permute.xlu0 %121
    %123 = vrot.lane.b32.xlu0 %v68, 32
    %v124 = vpop.permute.xlu0 %123
    %125 = vrot.lane.b32.xlu0 %v98, 32
    %v126 = vpop.permute.xlu0 %125
    %127 = vrot.lane.b32.xlu0 %v69, 32
    %v128 = vpop.permute.xlu0 %127
    %129 = vrot.lane.b32.xlu0 %v70, 32
    %v130 = vpop.permute.xlu0 %129
    %131 = vrot.lane.b32.xlu0 %v99, 32
    %v132 = vpop.permute.xlu0 %131
    %vm133 = vcmask 261120
    %v134 = vsel %vm133, %v122, %v124
    %v135 = vsel %vm133, %v124, %v126
    %v136 = vsel %vm133, %v128, %v130
    %v137 = vsel %vm133, %v130, %v132
    %v146 = vunpack.c.l.b16 %v47
    %v147 = vunpack.c.h.b16 %v47
    %v148 = vunpack.c.l.b16 %v48
    %v149 = vunpack.c.h.b16 %v48
    %v150 = vunpack.c.l.b16 %v49
    %v151 = vunpack.c.h.b16 %v49
    %v152 = vunpack.c.l.b16 %v50
    %v153 = vunpack.c.h.b16 %v50
    %v154 = vpack.c.b16 %v148, %v146
    %v155 = vpack.c.b16 %v149, %v147
    %v156 = vpack.c.b16 %v152, %v150
    %v157 = vpack.c.b16 %v153, %v151
    %162 = vrot.lane.b32.xlu0 %v154, 96
    %v163 = vpop.permute.xlu0 %162
    %164 = vrot.lane.b32.xlu0 %v155, 96
    %v165 = vpop.permute.xlu0 %164
    %166 = vrot.lane.b32.xlu0 %v156, 96
    %v167 = vpop.permute.xlu0 %166
    %168 = vrot.lane.b32.xlu0 %v157, 96
    %v169 = vpop.permute.xlu0 %168
    %v170 = vsel %vm83, %v163, %v165
    %v171 = vsel %vm83, %v167, %v169
    %v180 = vunpack.c.l.b16 %v51
    %v181 = vunpack.c.l.b16 %v52
    %v182 = vunpack.c.l.b16 %v53
    %v183 = vunpack.c.l.b16 %v54
    %v184 = vpack.c.b16 %v181, %v180
    %v185 = vpack.c.b16 %v183, %v182
    %186 = vrot.lane.b32.xlu0 %v154, 64
    %v187 = vpop.permute.xlu0 %186
    %188 = vrot.lane.b32.xlu0 %v155, 64
    %v189 = vpop.permute.xlu0 %188
    %190 = vrot.lane.b32.xlu0 %v184, 64
    %v191 = vpop.permute.xlu0 %190
    %192 = vrot.lane.b32.xlu0 %v156, 64
    %v193 = vpop.permute.xlu0 %192
    %194 = vrot.lane.b32.xlu0 %v157, 64
    %v195 = vpop.permute.xlu0 %194
    %196 = vrot.lane.b32.xlu0 %v185, 64
    %v197 = vpop.permute.xlu0 %196
    %v198 = vsel %vm112, %v187, %v189
    %v199 = vsel %vm112, %v189, %v191
    %v200 = vsel %vm112, %v193, %v195
    %v201 = vsel %vm112, %v195, %v197
    %v206 = vld [vmem:[%s1] sm:$0xff]
    %v207 = vld [vmem:[%s1 + $0x8] sm:$0xff]
    %v208 = vld [vmem:[%s1 + $0x10] sm:$0xff]
    %v209 = vld [vmem:[%s1 + $0x18] sm:$0xff]
    %v210 = vld [vmem:[%s1 + $0x20] sm:$0xff]
    %v211 = vld [vmem:[%s1 + $0x28] sm:$0xff]
    %v212 = vld [vmem:[%s1 + $0x30] sm:$0xff]
    %v213 = vld [vmem:[%s1 + $0x38] sm:$0xff]
    %v214 = vld [vmem:[%s2] sm:$0xff]
    %v215 = vld [vmem:[%s2 + $0x8] sm:$0xff]
    %v216 = vld [vmem:[%s2 + $0x10] sm:$0xff]
    %v217 = vld [vmem:[%s2 + $0x18] sm:$0xff]
    %v218 = vld [vmem:[%s2 + $0x20] sm:$0xff]
    %v219 = vld [vmem:[%s2 + $0x28] sm:$0xff]
    %v220 = vld [vmem:[%s2 + $0x30] sm:$0xff]
    %v221 = vld [vmem:[%s2 + $0x38] sm:$0xff]
    %223 = vset.pattern.permute.xlu0 0
    %224 = vperm.xlu0 %223, %v214
    %v225 = vpop.permute.xlu0 %224
    %228 = vset.pattern.permute.xlu0 0
    %229 = vperm.xlu0 %228, %v215
    %v230 = vpop.permute.xlu0 %229
    %233 = vset.pattern.permute.xlu0 0
    %234 = vperm.xlu0 %233, %v216
    %v235 = vpop.permute.xlu0 %234
    %238 = vset.pattern.permute.xlu0 0
    %239 = vperm.xlu0 %238, %v217
    %v240 = vpop.permute.xlu0 %239
    %243 = vset.pattern.permute.xlu0 0
    %244 = vperm.xlu0 %243, %v218
    %v245 = vpop.permute.xlu0 %244
    %248 = vset.pattern.permute.xlu0 0
    %249 = vperm.xlu0 %248, %v219
    %v250 = vpop.permute.xlu0 %249
    %253 = vset.pattern.permute.xlu0 0
    %254 = vperm.xlu0 %253, %v220
    %v255 = vpop.permute.xlu0 %254
    %258 = vset.pattern.permute.xlu0 0
    %259 = vperm.xlu0 %258, %v221
    %v260 = vpop.permute.xlu0 %259
    %v270 = vunpack.c.l.b16 %v206
    %v271 = vunpack.c.h.b16 %v206
    %v272 = vunpack.c.l.b16 %v207
    %v273 = vunpack.c.h.b16 %v207
    %v274 = vunpack.c.l.b16 %v208
    %v275 = vunpack.c.h.b16 %v208
    %v276 = vunpack.c.l.b16 %v209
    %v277 = vunpack.c.h.b16 %v209
    %v278 = vunpack.c.l.b16 %v210
    %v279 = vunpack.c.h.b16 %v210
    %v280 = vunpack.c.l.b16 %v211
    %v281 = vunpack.c.h.b16 %v211
    %v282 = vunpack.c.l.b16 %v212
    %v283 = vunpack.c.h.b16 %v212
    %v284 = vunpack.c.l.b16 %v213
    %v285 = vunpack.c.h.b16 %v213
    %v286 = vpack.c.b16 %v272, %v270
    %v287 = vpack.c.b16 %v273, %v271
    %v288 = vpack.c.b16 %v276, %v274
    %v289 = vpack.c.b16 %v277, %v275
    %v290 = vpack.c.b16 %v280, %v278
    %v291 = vpack.c.b16 %v281, %v279
    %v292 = vpack.c.b16 %v284, %v282
    %v293 = vpack.c.b16 %v285, %v283
    %vm298 = vcmask 785408
    %v300 = vsel %vm298, %v287, 0
    %v303 = vsel %vm298, %v289, 0
    %v306 = vsel %vm298, %v291, 0
    %v309 = vsel %vm298, %v293, 0
    %311 = vmatprep.subr.bf16.mxu0 %v137
    %312 = vmatpush1.bf16.msra.mxu0 %v136
    %313 = vmatprep.subr.bf16.mxu0 %v135
    %314 = vmatpush1.bf16.msra.mxu0 %v134
    %315 = vmatprep.subr.bf16.mxu0 %v116
    %316 = vmatpush1.bf16.msra.mxu0 %v115
    %317 = vmatprep.subr.bf16.mxu0 %v114
    %318 = vmatpush1.bf16.msra.mxu0 %v113
    %319 = vmatprep.subr.bf16.mxu0 %v82
    %320 = vmatpush1.bf16.msra.mxu0 %v85
    %321 = vmatprep.subr.bf16.mxu0 %v78
    %322 = vmatpush1.bf16.msra.mxu0 %v84
    %323 = vmatprep.subr.bf16.mxu0 %v70
    %324 = vmatpush1.bf16.msra.mxu0 %v69
    %325 = vmatprep.subr.bf16.mxu0 %v68
    %326 = vmatpush1.bf16.msra.mxu0 %v67
    %327 = vmatprep.subr.bf16.mxu0 0
    %328 = vmatpush2.bf16.msra.mxu0 0
    %329 = vmatprep.subr.bf16.mxu0 0
    %330 = vmatpush2.bf16.msra.mxu0 0
    %331 = vmatprep.subr.bf16.mxu0 %v201
    %332 = vmatpush2.bf16.msra.mxu0 %v200
    %333 = vmatprep.subr.bf16.mxu0 %v199
    %334 = vmatpush2.bf16.msra.mxu0 %v198
    %335 = vmatprep.subr.bf16.mxu0 %v169
    %336 = vmatpush2.bf16.msra.mxu0 %v171
    %337 = vmatprep.subr.bf16.mxu0 %v165
    %338 = vmatpush2.bf16.msra.mxu0 %v170
    %339 = vmatprep.subr.bf16.mxu0 %v157
    %340 = vmatpush2.bf16.msra.mxu0 %v156
    %341 = vmatprep.subr.bf16.mxu0 %v155
    %342 = vmatpush2.bf16.msra.mxu0 %v154
    %343 = vmatprep.mubr.bf16.mxu0 %v300
    %344 = vmatmul.mubr.bf16.gmra.mxu0 %v286
    %v345 = vpop.f32.mrf.mxu0
    %v346 = vadd.f32 %v225, %v345
    %v347 = vpop.f32.mrf.mxu0
    %v348 = vadd.f32 %v225, %v347
    %v349 = vpop.f32.mrf.mxu0
    %v350 = vadd.f32 %v230, %v349
    %v351 = vpop.f32.mrf.mxu0
    %v352 = vadd.f32 %v230, %v351
    %353 = vmatprep.mubr.bf16.mxu0 %v303
    %354 = vmatmul.mubr.bf16.gmra.mxu0 %v288
    %v355 = vpop.f32.mrf.mxu0
    %v356 = vadd.f32 %v235, %v355
    %v357 = vpop.f32.mrf.mxu0
    %v358 = vadd.f32 %v235, %v357
    %v359 = vpop.f32.mrf.mxu0
    %v360 = vadd.f32 %v240, %v359
    %v361 = vpop.f32.mrf.mxu0
    %v362 = vadd.f32 %v240, %v361
    %363 = vmatprep.mubr.bf16.mxu0 %v306
    %364 = vmatmul.mubr.bf16.gmra.mxu0 %v290
    %v365 = vpop.f32.mrf.mxu0
    %v366 = vadd.f32 %v245, %v365
    %v367 = vpop.f32.mrf.mxu0
    %v368 = vadd.f32 %v245, %v367
    %v369 = vpop.f32.mrf.mxu0
    %v370 = vadd.f32 %v250, %v369
    %v371 = vpop.f32.mrf.mxu0
    %v372 = vadd.f32 %v250, %v371
    %373 = vmatprep.mubr.bf16.mxu0 %v309
    %374 = vmatmul.mubr.bf16.gmra.mxu0 %v292
    %v375 = vpop.f32.mrf.mxu0
    %v376 = vadd.f32 %v255, %v375
    %v377 = vpop.f32.mrf.mxu0
    %v378 = vadd.f32 %v255, %v377
    %v379 = vpop.f32.mrf.mxu0
    %v380 = vadd.f32 %v260, %v379
    %v381 = vpop.f32.mrf.mxu0
    %v382 = vadd.f32 %v260, %v381
    %383 = vdwg.mxu0
    %v384 = vtanh.pop %v346
    %v385 = vtanh.pop %v348
    %v386 = vtanh.pop %v350
    %v387 = vtanh.pop %v352
    %v388 = vtanh.pop %v356
    %v389 = vtanh.pop %v358
    %v390 = vtanh.pop %v360
    %v391 = vtanh.pop %v362
    %v392 = vxor.u32 %v366, 2147483648
    %v393 = vxor.u32 %v368, 2147483648
    %v394 = vxor.u32 %v370, 2147483648
    %v395 = vxor.u32 %v372, 2147483648
    %v396 = vxor.u32 %v376, 2147483648
    %v397 = vxor.u32 %v378, 2147483648
    %v398 = vxor.u32 %v380, 2147483648
    %v399 = vxor.u32 %v382, 2147483648
    %v400 = vmul.f32 %v392, 1.442695
    %v401 = vpow.pop %v400
    %v402 = vmul.f32 %v393, 1.442695
    %v403 = vpow.pop %v402
    %v404 = vmul.f32 %v394, 1.442695
    %v405 = vpow.pop %v404
    %v406 = vmul.f32 %v395, 1.442695
    %v407 = vpow.pop %v406
    %v408 = vmul.f32 %v396, 1.442695
    %v409 = vpow.pop %v408
    %v410 = vmul.f32 %v397, 1.442695
    %v411 = vpow.pop %v410
    %v412 = vmul.f32 %v398, 1.442695
    %v413 = vpow.pop %v412
    %v414 = vmul.f32 %v399, 1.442695
    %v415 = vpow.pop %v414
    %v416 = vadd.f32 %v401, 1.0
    %v417 = vadd.f32 %v403, 1.0
    %v418 = vadd.f32 %v405, 1.0
    %v419 = vadd.f32 %v407, 1.0
    %v420 = vadd.f32 %v409, 1.0
    %v421 = vadd.f32 %v411, 1.0
    %v422 = vadd.f32 %v413, 1.0
    %v423 = vadd.f32 %v415, 1.0
    %v424 = vrcp.pop %v416
    %v425 = vmul.f32 1.0, %v424
    %v426 = vrcp.pop %v417
    %v427 = vmul.f32 1.0, %v426
    %v428 = vrcp.pop %v418
    %v429 = vmul.f32 1.0, %v428
    %v430 = vrcp.pop %v419
    %v431 = vmul.f32 1.0, %v430
    %v432 = vrcp.pop %v420
    %v433 = vmul.f32 1.0, %v432
    %v434 = vrcp.pop %v421
    %v435 = vmul.f32 1.0, %v434
    %v436 = vrcp.pop %v422
    %v437 = vmul.f32 1.0, %v436
    %v438 = vrcp.pop %v423
    %v439 = vmul.f32 1.0, %v438
    %v440 = vmul.f32 %v384, %v425
    %v441 = vmul.f32 %v385, %v427
    %v442 = vmul.f32 %v386, %v429
    %v443 = vmul.f32 %v387, %v431
    %v444 = vmul.f32 %v388, %v433
    %v445 = vmul.f32 %v389, %v435
    %v446 = vmul.f32 %v390, %v437
    %v447 = vmul.f32 %v391, %v439
    %v448 = vld [vmem:[%s3] sm:$0xf]
    %v449 = vld [vmem:[%s3 + $0x4] sm:$0xf]
    %v450 = vld [vmem:[%s3 + $0x8] sm:$0xf]
    %v451 = vld [vmem:[%s3 + $0xc] sm:$0xf]
    %v452 = vld [vmem:[%s3 + $0x10] sm:$0xf]
    %v453 = vld [vmem:[%s3 + $0x14] sm:$0xf]
    %v454 = vld [vmem:[%s3 + $0x18] sm:$0xf]
    %v455 = vld [vmem:[%s3 + $0x1c] sm:$0xf]
    %v456 = vpack.c.bf16 %v442, %v440
    %v457 = vpack.c.bf16 %v443, %v441
    %v458 = vpack.c.bf16 %v446, %v444
    %v459 = vpack.c.bf16 %v447, %v445
    %v468 = vunpack.c.l.b16 %v448
    %v469 = vunpack.c.l.b16 %v449
    %v470 = vunpack.c.l.b16 %v450
    %v471 = vunpack.c.l.b16 %v451
    %v472 = vunpack.c.l.b16 %v452
    %v473 = vunpack.c.l.b16 %v453
    %v474 = vunpack.c.l.b16 %v454
    %v475 = vunpack.c.l.b16 %v455
    %v476 = vpack.c.b16 %v469, %v468
    %v477 = vpack.c.b16 %v471, %v470
    %v478 = vpack.c.b16 %v473, %v472
    %v479 = vpack.c.b16 %v475, %v474
    %vm480 = vcmask 261120
    %v482 = vsel %vm480, %v476, 0
    %v485 = vsel %vm480, %v477, 0
    %v488 = vsel %vm480, %v478, 0
    %v491 = vsel %vm480, %v479, 0
    %493 = vmatprep.subr.bf16.mxu0 0
    %494 = vmatpush1.bf16.msra.mxu0 0
    %495 = vmatprep.subr.bf16.mxu0 0
    %496 = vmatpush1.bf16.msra.mxu0 0
    %497 = vmatprep.subr.bf16.mxu0 0
    %498 = vmatpush1.bf16.msra.mxu0 0
    %499 = vmatprep.subr.bf16.mxu0 0
    %500 = vmatpush1.bf16.msra.mxu0 0
    %501 = vmatprep.subr.bf16.mxu0 0
    %502 = vmatpush1.bf16.msra.mxu0 0
    %503 = vmatprep.subr.bf16.mxu0 0
    %504 = vmatpush1.bf16.msra.mxu0 0
    %505 = vmatprep.subr.bf16.mxu0 %v459
    %506 = vmatpush1.bf16.msra.mxu0 %v458
    %507 = vmatprep.subr.bf16.mxu0 %v457
    %508 = vmatpush1.bf16.msra.mxu0 %v456
    %509 = vmatprep.subr.bf16.mxu0 0
    %510 = vmatpush2.bf16.msra.mxu0 0
    %511 = vmatprep.subr.bf16.mxu0 0
    %512 = vmatpush2.bf16.msra.mxu0 0
    %513 = vmatprep.subr.bf16.mxu0 0
    %514 = vmatpush2.bf16.msra.mxu0 0
    %515 = vmatprep.subr.bf16.mxu0 0
    %516 = vmatpush2.bf16.msra.mxu0 0
    %517 = vmatprep.subr.bf16.mxu0 0
    %518 = vmatpush2.bf16.msra.mxu0 0
    %519 = vmatprep.subr.bf16.mxu0 0
    %520 = vmatpush2.bf16.msra.mxu0 0
    %521 = vmatprep.subr.bf16.mxu0 0
    %522 = vmatpush2.bf16.msra.mxu0 0
    %523 = vmatprep.subr.bf16.mxu0 0
    %524 = vmatpush2.bf16.msra.mxu0 0
    %525 = vmatprep.mubr.bf16.mxu0 0
    %526 = vmatmul.mubr.bf16.gmra.mxu0 %v482
    %v527 = vpop.f32.mrf.mxu0
    %v528 = vadd.f32 0.0, %v527
    %v529 = vpop.f32.mrf.mxu0
    %v530 = vadd.f32 0.0, %v529
    %v531 = vpop.f32.mrf.mxu0
    %v532 = vadd.f32 0.0, %v531
    %v533 = vpop.f32.mrf.mxu0
    %v534 = vadd.f32 0.0, %v533
    %535 = vmatprep.mubr.bf16.mxu0 0
    %536 = vmatmul.mubr.bf16.gmra.mxu0 %v485
    %v537 = vpop.f32.mrf.mxu0
    %v538 = vadd.f32 0.0, %v537
    %v539 = vpop.f32.mrf.mxu0
    %v540 = vadd.f32 0.0, %v539
    %v541 = vpop.f32.mrf.mxu0
    %v542 = vadd.f32 0.0, %v541
    %v543 = vpop.f32.mrf.mxu0
    %v544 = vadd.f32 0.0, %v543
    %545 = vmatprep.mubr.bf16.mxu0 0
    %546 = vmatmul.mubr.bf16.gmra.mxu0 %v488
    %v547 = vpop.f32.mrf.mxu0
    %v548 = vadd.f32 0.0, %v547
    %v549 = vpop.f32.mrf.mxu0
    %v550 = vadd.f32 0.0, %v549
    %v551 = vpop.f32.mrf.mxu0
    %v552 = vadd.f32 0.0, %v551
    %v553 = vpop.f32.mrf.mxu0
    %v554 = vadd.f32 0.0, %v553
    %555 = vmatprep.mubr.bf16.mxu0 0
    %556 = vmatmul.mubr.bf16.gmra.mxu0 %v491
    %v557 = vpop.f32.mrf.mxu0
    %v558 = vadd.f32 0.0, %v557
    %v559 = vpop.f32.mrf.mxu0
    %v560 = vadd.f32 0.0, %v559
    %v561 = vpop.f32.mrf.mxu0
    %v562 = vadd.f32 0.0, %v561
    %v563 = vpop.f32.mrf.mxu0
    %v564 = vadd.f32 0.0, %v563
    %565 = vdwg.mxu0
    %v566 = vld [vmem:[#allocation2] sm:$0xff]
    %v567 = vld [vmem:[#allocation2 + $0x8] sm:$0xff]
    %v568 = vld [vmem:[#allocation2 + $0x10] sm:$0xff]
    %v569 = vld [vmem:[#allocation2 + $0x18] sm:$0xff]
    %s570 = scalar_lea.vmem [#allocation2], 32
    %v571 = vld [vmem:[%s570] sm:$0xff]
    %v572 = vld [vmem:[%s570 + $0x8] sm:$0xff]
    %v573 = vld [vmem:[%s570 + $0x10] sm:$0xff]
    %v574 = vld [vmem:[%s570 + $0x18] sm:$0xff]
    %v575 = vld [vmem:[%s4] sm:$0xff]
    %v576 = vld [vmem:[%s4 + $0x8] sm:$0xff]
    %v577 = vld [vmem:[%s4 + $0x10] sm:$0xff]
    %v578 = vld [vmem:[%s4 + $0x18] sm:$0xff]
    %580 = vset.pattern.permute.xlu0 0
    %581 = vperm.xlu0 %580, %v575
    %v582 = vpop.permute.xlu0 %581
    %585 = vset.pattern.permute.xlu0 0
    %586 = vperm.xlu0 %585, %v576
    %v587 = vpop.permute.xlu0 %586
    %590 = vset.pattern.permute.xlu0 0
    %591 = vperm.xlu0 %590, %v577
    %v592 = vpop.permute.xlu0 %591
    %595 = vset.pattern.permute.xlu0 0
    %596 = vperm.xlu0 %595, %v578
    %v597 = vpop.permute.xlu0 %596
    %599 = vst [vmem:[#allocation5] sm:$0xff] 0.0
    %vm600 = vcmask 523264
    %601 = vst.msk [vmem:[#allocation5 + $0x8] sm:$0xff] %vm600, 0.0
    %602 = vst [vmem:[#allocation5 + $0x20] sm:$0xff] 0.0
    %603 = vst.msk [vmem:[#allocation5 + $0x28] sm:$0xff] %vm600, 0.0
    %604 = vst [vmem:[#allocation5 + $0x40] sm:$0xff] 0.0
    %605 = vst.msk [vmem:[#allocation5 + $0x48] sm:$0xff] %vm600, 0.0
    %606 = vst [vmem:[#allocation5 + $0x60] sm:$0xff] 0.0
    %607 = vst.msk [vmem:[#allocation5 + $0x68] sm:$0xff] %vm600, 0.0
    %v609 = vsel %vm480, %v548, 0
    %v612 = vsel %vm480, %v552, 0
    %v615 = vsel %vm480, %v558, 0
    %v618 = vsel %vm480, %v562, 0
    %620 = vmatprep.subr.mxu0 0.0
    %621 = vmatpush1.msra.mxu0 0.0
    %622 = vmatprep.subr.mxu0 0.0
    %623 = vmatpush1.msra.mxu0 0.0
    %624 = vmatprep.subr.mxu0 0.0
    %625 = vmatpush1.msra.mxu0 0.0
    %626 = vmatprep.subr.mxu0 0.0
    %627 = vmatpush1.msra.mxu0 0.0
    %628 = vmatprep.subr.mxu0 0.0
    %629 = vmatpush1.msra.mxu0 0.0
    %630 = vmatprep.subr.mxu0 0.0
    %631 = vmatpush1.msra.mxu0 0.0
    %632 = vmatprep.subr.mxu0 0.0
    %633 = vmatpush1.msra.mxu0 0.0
    %634 = vmatprep.subr.mxu0 0.0
    %635 = vmatpush1.msra.mxu0 0.0
    %636 = vmatprep.subr.mxu0 0.0
    %637 = vmatpush1.msra.mxu0 0.0
    %638 = vmatprep.subr.mxu0 0.0
    %639 = vmatpush1.msra.mxu0 0.0
    %640 = vmatprep.subr.mxu0 0.0
    %641 = vmatpush1.msra.mxu0 0.0
    %642 = vmatprep.subr.mxu0 0.0
    %643 = vmatpush1.msra.mxu0 0.0
    %644 = vmatprep.subr.mxu0 0.0
    %645 = vmatpush1.msra.mxu0 %v574
    %646 = vmatprep.subr.mxu0 0.0
    %647 = vmatpush1.msra.mxu0 %v573
    %648 = vmatprep.subr.mxu0 0.0
    %649 = vmatpush1.msra.mxu0 %v572
    %650 = vmatprep.subr.mxu0 0.0
    %651 = vmatpush1.msra.mxu0 %v571
    %652 = vmatprep.subr.mxu0 0.0
    %653 = vmatpush2.msra.mxu0 0.0
    %654 = vmatprep.subr.mxu0 0.0
    %655 = vmatpush2.msra.mxu0 0.0
    %656 = vmatprep.subr.mxu0 0.0
    %657 = vmatpush2.msra.mxu0 0.0
    %658 = vmatprep.subr.mxu0 0.0
    %659 = vmatpush2.msra.mxu0 0.0
    %660 = vmatprep.subr.mxu0 0.0
    %661 = vmatpush2.msra.mxu0 0.0
    %662 = vmatprep.subr.mxu0 0.0
    %663 = vmatpush2.msra.mxu0 0.0
    %664 = vmatprep.subr.mxu0 0.0
    %665 = vmatpush2.msra.mxu0 0.0
    %666 = vmatprep.subr.mxu0 0.0
    %667 = vmatpush2.msra.mxu0 0.0
    %668 = vmatprep.subr.mxu0 0.0
    %669 = vmatpush2.msra.mxu0 0.0
    %670 = vmatprep.subr.mxu0 0.0
    %671 = vmatpush2.msra.mxu0 0.0
    %672 = vmatprep.subr.mxu0 0.0
    %673 = vmatpush2.msra.mxu0 0.0
    %674 = vmatprep.subr.mxu0 0.0
    %675 = vmatpush2.msra.mxu0 0.0
    %676 = vmatprep.subr.mxu0 0.0
    %677 = vmatpush2.msra.mxu0 0.0
    %678 = vmatprep.subr.mxu0 0.0
    %679 = vmatpush2.msra.mxu0 0.0
    %680 = vmatprep.subr.mxu0 0.0
    %681 = vmatpush2.msra.mxu0 0.0
    %682 = vmatprep.subr.mxu0 0.0
    %683 = vmatpush2.msra.mxu0 0.0
    %684 = vmatprep.mubr.f32.mxu0 0.0
    %685 = vmatmul.mubr.f32.gmra.mxu0 %v609
    %v686 = vpop.f32.mrf.mxu0
    %v687 = vadd.f32 0.0, %v686
    %v688 = vpop.f32.mrf.mxu0
    %689 = vmatprep.mubr.f32.mxu0 0.0
    %690 = vmatmul.mubr.f32.gmra.mxu0 %v612
    %v691 = vpop.f32.mrf.mxu0
    %v692 = vadd.f32 0.0, %v691
    %v693 = vpop.f32.mrf.mxu0
    %694 = vmatprep.mubr.f32.mxu0 0.0
    %695 = vmatmul.mubr.f32.gmra.mxu0 %v615
    %v696 = vpop.f32.mrf.mxu0
    %v697 = vadd.f32 0.0, %v696
    %v698 = vpop.f32.mrf.mxu0
    %699 = vmatprep.mubr.f32.mxu0 0.0
    %700 = vmatmul.mubr.f32.gmra.mxu0 %v618
    %v701 = vpop.f32.mrf.mxu0
    %v702 = vadd.f32 0.0, %v701
    %v703 = vpop.f32.mrf.mxu0
    %704 = vdwg.mxu0
    %v706 = vsel %vm480, %v528, 0
    %v709 = vsel %vm480, %v532, 0
    %v712 = vsel %vm480, %v538, 0
    %v715 = vsel %vm480, %v542, 0
    %717 = vmatprep.subr.mxu0 0.0
    %718 = vmatpush1.msra.mxu0 0.0
    %719 = vmatprep.subr.mxu0 0.0
    %720 = vmatpush1.msra.mxu0 0.0
    %721 = vmatprep.subr.mxu0 0.0
    %722 = vmatpush1.msra.mxu0 0.0
    %723 = vmatprep.subr.mxu0 0.0
    %724 = vmatpush1.msra.mxu0 0.0
    %725 = vmatprep.subr.mxu0 0.0
    %726 = vmatpush1.msra.mxu0 0.0
    %727 = vmatprep.subr.mxu0 0.0
    %728 = vmatpush1.msra.mxu0 0.0
    %729 = vmatprep.subr.mxu0 0.0
    %730 = vmatpush1.msra.mxu0 0.0
    %731 = vmatprep.subr.mxu0 0.0
    %732 = vmatpush1.msra.mxu0 0.0
    %733 = vmatprep.subr.mxu0 0.0
    %734 = vmatpush1.msra.mxu0 0.0
    %735 = vmatprep.subr.mxu0 0.0
    %736 = vmatpush1.msra.mxu0 0.0
    %737 = vmatprep.subr.mxu0 0.0
    %738 = vmatpush1.msra.mxu0 0.0
    %739 = vmatprep.subr.mxu0 0.0
    %740 = vmatpush1.msra.mxu0 0.0
    %741 = vmatprep.subr.mxu0 0.0
    %742 = vmatpush1.msra.mxu0 %v569
    %743 = vmatprep.subr.mxu0 0.0
    %744 = vmatpush1.msra.mxu0 %v568
    %745 = vmatprep.subr.mxu0 0.0
    %746 = vmatpush1.msra.mxu0 %v567
    %747 = vmatprep.subr.mxu0 0.0
    %748 = vmatpush1.msra.mxu0 %v566
    %749 = vmatprep.subr.mxu0 0.0
    %750 = vmatpush2.msra.mxu0 0.0
    %751 = vmatprep.subr.mxu0 0.0
    %752 = vmatpush2.msra.mxu0 0.0
    %753 = vmatprep.subr.mxu0 0.0
    %754 = vmatpush2.msra.mxu0 0.0
    %755 = vmatprep.subr.mxu0 0.0
    %756 = vmatpush2.msra.mxu0 0.0
    %757 = vmatprep.subr.mxu0 0.0
    %758 = vmatpush2.msra.mxu0 0.0
    %759 = vmatprep.subr.mxu0 0.0
    %760 = vmatpush2.msra.mxu0 0.0
    %761 = vmatprep.subr.mxu0 0.0
    %762 = vmatpush2.msra.mxu0 0.0
    %763 = vmatprep.subr.mxu0 0.0
    %764 = vmatpush2.msra.mxu0 0.0
    %765 = vmatprep.subr.mxu0 0.0
    %766 = vmatpush2.msra.mxu0 0.0
    %767 = vmatprep.subr.mxu0 0.0
    %768 = vmatpush2.msra.mxu0 0.0
    %769 = vmatprep.subr.mxu0 0.0
    %770 = vmatpush2.msra.mxu0 0.0
    %771 = vmatprep.subr.mxu0 0.0
    %772 = vmatpush2.msra.mxu0 0.0
    %773 = vmatprep.subr.mxu0 0.0
    %774 = vmatpush2.msra.mxu0 0.0
    %775 = vmatprep.subr.mxu0 0.0
    %776 = vmatpush2.msra.mxu0 0.0
    %777 = vmatprep.subr.mxu0 0.0
    %778 = vmatpush2.msra.mxu0 0.0
    %779 = vmatprep.subr.mxu0 0.0
    %780 = vmatpush2.msra.mxu0 0.0
    %781 = vmatprep.mubr.f32.mxu0 0.0
    %782 = vmatmul.mubr.f32.gmra.mxu0 %v706
    %v783 = vpop.f32.mrf.mxu0
    %v784 = vadd.f32 %v687, %v783
    %v785 = vpop.f32.mrf.mxu0
    %786 = vmatprep.mubr.f32.mxu0 0.0
    %787 = vmatmul.mubr.f32.gmra.mxu0 %v709
    %v788 = vpop.f32.mrf.mxu0
    %v789 = vadd.f32 %v692, %v788
    %v790 = vpop.f32.mrf.mxu0
    %791 = vmatprep.mubr.f32.mxu0 0.0
    %792 = vmatmul.mubr.f32.gmra.mxu0 %v712
    %v793 = vpop.f32.mrf.mxu0
    %v794 = vadd.f32 %v697, %v793
    %v795 = vpop.f32.mrf.mxu0
    %796 = vmatprep.mubr.f32.mxu0 0.0
    %797 = vmatmul.mubr.f32.gmra.mxu0 %v715
    %v798 = vpop.f32.mrf.mxu0
    %v799 = vadd.f32 %v702, %v798
    %v800 = vpop.f32.mrf.mxu0
    %801 = vdwg.mxu0
    %v802 = vadd.f32 %v784, %v582
    %v803 = vadd.f32 %v789, %v587
    %v804 = vadd.f32 %v794, %v592
    %v805 = vadd.f32 %v799, %v597
    %810 = vrot.lane.b32.xlu0 %v802, 64
    %v811 = vpop.permute.xlu0 %810
    %812 = vrot.lane.b32.xlu0 %v803, 64
    %v813 = vpop.permute.xlu0 %812
    %814 = vrot.lane.b32.xlu0 %v804, 64
    %v815 = vpop.permute.xlu0 %814
    %816 = vrot.lane.b32.xlu0 %v805, 64
    %v817 = vpop.permute.xlu0 %816
    %vm822 = vcmask 785920
    %823 = vst.msk [vmem:[#allocation5 + $0x8] sm:$0xff] %vm822, %v811
    %824 = vst.msk [vmem:[#allocation5 + $0x28] sm:$0xff] %vm822, %v813
    %825 = vst.msk [vmem:[#allocation5 + $0x48] sm:$0xff] %vm822, %v815
    %826 = vst.msk [vmem:[#allocation5 + $0x68] sm:$0xff] %vm822, %v817
    %827 = vrot.lane.b32.xlu0 %v548, 96
    %v828 = vpop.permute.xlu0 %827
    %829 = vrot.lane.b32.xlu0 %v552, 96
    %v830 = vpop.permute.xlu0 %829
    %831 = vrot.lane.b32.xlu0 %v558, 96
    %v832 = vpop.permute.xlu0 %831
    %833 = vrot.lane.b32.xlu0 %v562, 96
    %v834 = vpop.permute.xlu0 %833
    %v835 = vsel %vm480, %v828, 0
    %v837 = vsel %vm480, %v830, 0
    %v839 = vsel %vm480, %v832, 0
    %v841 = vsel %vm480, %v834, 0
    %843 = vmatprep.subr.mxu0 0.0
    %844 = vmatpush1.msra.mxu0 0.0
    %845 = vmatprep.subr.mxu0 0.0
    %846 = vmatpush1.msra.mxu0 0.0
    %847 = vmatprep.subr.mxu0 0.0
    %848 = vmatpush1.msra.mxu0 0.0
    %849 = vmatprep.subr.mxu0 0.0
    %850 = vmatpush1.msra.mxu0 0.0
    %851 = vmatprep.subr.mxu0 0.0
    %852 = vmatpush1.msra.mxu0 0.0
    %853 = vmatprep.subr.mxu0 0.0
    %854 = vmatpush1.msra.mxu0 0.0
    %855 = vmatprep.subr.mxu0 0.0
    %856 = vmatpush1.msra.mxu0 0.0
    %857 = vmatprep.subr.mxu0 0.0
    %858 = vmatpush1.msra.mxu0 0.0
    %859 = vmatprep.subr.mxu0 0.0
    %860 = vmatpush1.msra.mxu0 0.0
    %861 = vmatprep.subr.mxu0 0.0
    %862 = vmatpush1.msra.mxu0 0.0
    %863 = vmatprep.subr.mxu0 0.0
    %864 = vmatpush1.msra.mxu0 0.0
    %865 = vmatprep.subr.mxu0 0.0
    %866 = vmatpush1.msra.mxu0 0.0
    %867 = vmatprep.subr.mxu0 0.0
    %868 = vmatpush1.msra.mxu0 %v574
    %869 = vmatprep.subr.mxu0 0.0
    %870 = vmatpush1.msra.mxu0 %v573
    %871 = vmatprep.subr.mxu0 0.0
    %872 = vmatpush1.msra.mxu0 %v572
    %873 = vmatprep.subr.mxu0 0.0
    %874 = vmatpush1.msra.mxu0 %v571
    %875 = vmatprep.subr.mxu0 0.0
    %876 = vmatpush2.msra.mxu0 0.0
    %877 = vmatprep.subr.mxu0 0.0
    %878 = vmatpush2.msra.mxu0 0.0
    %879 = vmatprep.subr.mxu0 0.0
    %880 = vmatpush2.msra.mxu0 0.0
    %881 = vmatprep.subr.mxu0 0.0
    %882 = vmatpush2.msra.mxu0 0.0
    %883 = vmatprep.subr.mxu0 0.0
    %884 = vmatpush2.msra.mxu0 0.0
    %885 = vmatprep.subr.mxu0 0.0
    %886 = vmatpush2.msra.mxu0 0.0
    %887 = vmatprep.subr.mxu0 0.0
    %888 = vmatpush2.msra.mxu0 0.0
    %889 = vmatprep.subr.mxu0 0.0
    %890 = vmatpush2.msra.mxu0 0.0
    %891 = vmatprep.subr.mxu0 0.0
    %892 = vmatpush2.msra.mxu0 0.0
    %893 = vmatprep.subr.mxu0 0.0
    %894 = vmatpush2.msra.mxu0 0.0
    %895 = vmatprep.subr.mxu0 0.0
    %896 = vmatpush2.msra.mxu0 0.0
    %897 = vmatprep.subr.mxu0 0.0
    %898 = vmatpush2.msra.mxu0 0.0
    %899 = vmatprep.subr.mxu0 0.0
    %900 = vmatpush2.msra.mxu0 0.0
    %901 = vmatprep.subr.mxu0 0.0
    %902 = vmatpush2.msra.mxu0 0.0
    %903 = vmatprep.subr.mxu0 0.0
    %904 = vmatpush2.msra.mxu0 0.0
    %905 = vmatprep.subr.mxu0 0.0
    %906 = vmatpush2.msra.mxu0 0.0
    %907 = vmatprep.mubr.f32.mxu0 0.0
    %908 = vmatmul.mubr.f32.gmra.mxu0 %v835
    %v909 = vpop.f32.mrf.mxu0
    %v910 = vadd.f32 0.0, %v909
    %v911 = vpop.f32.mrf.mxu0
    %912 = vmatprep.mubr.f32.mxu0 0.0
    %913 = vmatmul.mubr.f32.gmra.mxu0 %v837
    %v914 = vpop.f32.mrf.mxu0
    %v915 = vadd.f32 0.0, %v914
    %v916 = vpop.f32.mrf.mxu0
    %917 = vmatprep.mubr.f32.mxu0 0.0
    %918 = vmatmul.mubr.f32.gmra.mxu0 %v839
    %v919 = vpop.f32.mrf.mxu0
    %v920 = vadd.f32 0.0, %v919
    %v921 = vpop.f32.mrf.mxu0
    %922 = vmatprep.mubr.f32.mxu0 0.0
    %923 = vmatmul.mubr.f32.gmra.mxu0 %v841
    %v924 = vpop.f32.mrf.mxu0
    %v925 = vadd.f32 0.0, %v924
    %v926 = vpop.f32.mrf.mxu0
    %927 = vdwg.mxu0
    %928 = vrot.lane.b32.xlu0 %v528, 96
    %v929 = vpop.permute.xlu0 %928
    %930 = vrot.lane.b32.xlu0 %v532, 96
    %v931 = vpop.permute.xlu0 %930
    %932 = vrot.lane.b32.xlu0 %v538, 96
    %v933 = vpop.permute.xlu0 %932
    %934 = vrot.lane.b32.xlu0 %v542, 96
    %v935 = vpop.permute.xlu0 %934
    %v936 = vsel %vm480, %v929, 0
    %v938 = vsel %vm480, %v931, 0
    %v940 = vsel %vm480, %v933, 0
    %v942 = vsel %vm480, %v935, 0
    %944 = vmatprep.subr.mxu0 0.0
    %945 = vmatpush1.msra.mxu0 0.0
    %946 = vmatprep.subr.mxu0 0.0
    %947 = vmatpush1.msra.mxu0 0.0
    %948 = vmatprep.subr.mxu0 0.0
    %949 = vmatpush1.msra.mxu0 0.0
    %950 = vmatprep.subr.mxu0 0.0
    %951 = vmatpush1.msra.mxu0 0.0
    %952 = vmatprep.subr.mxu0 0.0
    %953 = vmatpush1.msra.mxu0 0.0
    %954 = vmatprep.subr.mxu0 0.0
    %955 = vmatpush1.msra.mxu0 0.0
    %956 = vmatprep.subr.mxu0 0.0
    %957 = vmatpush1.msra.mxu0 0.0
    %958 = vmatprep.subr.mxu0 0.0
    %959 = vmatpush1.msra.mxu0 0.0
    %960 = vmatprep.subr.mxu0 0.0
    %961 = vmatpush1.msra.mxu0 0.0
    %962 = vmatprep.subr.mxu0 0.0
    %963 = vmatpush1.msra.mxu0 0.0
    %964 = vmatprep.subr.mxu0 0.0
    %965 = vmatpush1.msra.mxu0 0.0
    %966 = vmatprep.subr.mxu0 0.0
    %967 = vmatpush1.msra.mxu0 0.0
    %968 = vmatprep.subr.mxu0 0.0
    %969 = vmatpush1.msra.mxu0 %v569
    %970 = vmatprep.subr.mxu0 0.0
    %971 = vmatpush1.msra.mxu0 %v568
    %972 = vmatprep.subr.mxu0 0.0
    %973 = vmatpush1.msra.mxu0 %v567
    %974 = vmatprep.subr.mxu0 0.0
    %975 = vmatpush1.msra.mxu0 %v566
    %976 = vmatprep.subr.mxu0 0.0
    %977 = vmatpush2.msra.mxu0 0.0
    %978 = vmatprep.subr.mxu0 0.0
    %979 = vmatpush2.msra.mxu0 0.0
    %980 = vmatprep.subr.mxu0 0.0
    %981 = vmatpush2.msra.mxu0 0.0
    %982 = vmatprep.subr.mxu0 0.0
    %983 = vmatpush2.msra.mxu0 0.0
    %984 = vmatprep.subr.mxu0 0.0
    %985 = vmatpush2.msra.mxu0 0.0
    %986 = vmatprep.subr.mxu0 0.0
    %987 = vmatpush2.msra.mxu0 0.0
    %988 = vmatprep.subr.mxu0 0.0
    %989 = vmatpush2.msra.mxu0 0.0
    %990 = vmatprep.subr.mxu0 0.0
    %991 = vmatpush2.msra.mxu0 0.0
    %992 = vmatprep.subr.mxu0 0.0
    %993 = vmatpush2.msra.mxu0 0.0
    %994 = vmatprep.subr.mxu0 0.0
    %995 = vmatpush2.msra.mxu0 0.0
    %996 = vmatprep.subr.mxu0 0.0
    %997 = vmatpush2.msra.mxu0 0.0
    %998 = vmatprep.subr.mxu0 0.0
    %999 = vmatpush2.msra.mxu0 0.0
    %1000 = vmatprep.subr.mxu0 0.0
    %1001 = vmatpush2.msra.mxu0 0.0
    %1002 = vmatprep.subr.mxu0 0.0
    %1003 = vmatpush2.msra.mxu0 0.0
    %1004 = vmatprep.subr.mxu0 0.0
    %1005 = vmatpush2.msra.mxu0 0.0
    %1006 = vmatprep.subr.mxu0 0.0
    %1007 = vmatpush2.msra.mxu0 0.0
    %1008 = vmatprep.mubr.f32.mxu0 0.0
    %1009 = vmatmul.mubr.f32.gmra.mxu0 %v936
    %v1010 = vpop.f32.mrf.mxu0
    %v1011 = vadd.f32 %v910, %v1010
    %v1012 = vpop.f32.mrf.mxu0
    %1013 = vmatprep.mubr.f32.mxu0 0.0
    %1014 = vmatmul.mubr.f32.gmra.mxu0 %v938
    %v1015 = vpop.f32.mrf.mxu0
    %v1016 = vadd.f32 %v915, %v1015
    %v1017 = vpop.f32.mrf.mxu0
    %1018 = vmatprep.mubr.f32.mxu0 0.0
    %1019 = vmatmul.mubr.f32.gmra.mxu0 %v940
    %v1020 = vpop.f32.mrf.mxu0
    %v1021 = vadd.f32 %v920, %v1020
    %v1022 = vpop.f32.mrf.mxu0
    %1023 = vmatprep.mubr.f32.mxu0 0.0
    %1024 = vmatmul.mubr.f32.gmra.mxu0 %v942
    %v1025 = vpop.f32.mrf.mxu0
    %v1026 = vadd.f32 %v925, %v1025
    %v1027 = vpop.f32.mrf.mxu0
    %1028 = vdwg.mxu0
    %v1029 = vadd.f32 %v1011, %v582
    %v1030 = vadd.f32 %v1016, %v587
    %v1031 = vadd.f32 %v1021, %v592
    %v1032 = vadd.f32 %v1026, %v597
    %1037 = vrot.lane.b32.xlu0 %v1029, 96
    %v1038 = vpop.permute.xlu0 %1037
    %1039 = vrot.lane.b32.xlu0 %v1030, 96
    %v1040 = vpop.permute.xlu0 %1039
    %1041 = vrot.lane.b32.xlu0 %v1031, 96
    %v1042 = vpop.permute.xlu0 %1041
    %1043 = vrot.lane.b32.xlu0 %v1032, 96
    %v1044 = vpop.permute.xlu0 %1043
    %vm1049 = vcmask 1048320
    %1050 = vst.msk [vmem:[#allocation5 + $0x8] sm:$0xff] %vm1049, %v1038
    %1051 = vst.msk [vmem:[#allocation5 + $0x28] sm:$0xff] %vm1049, %v1040
    %1052 = vst.msk [vmem:[#allocation5 + $0x48] sm:$0xff] %vm1049, %v1042
    %1053 = vst.msk [vmem:[#allocation5 + $0x68] sm:$0xff] %vm1049, %v1044
    %1054 = vrot.lane.b32.xlu0 %v548, 64
    %v1055 = vpop.permute.xlu0 %1054
    %1056 = vrot.lane.b32.xlu0 %v552, 64
    %v1057 = vpop.permute.xlu0 %1056
    %1058 = vrot.lane.b32.xlu0 %v558, 64
    %v1059 = vpop.permute.xlu0 %1058
    %1060 = vrot.lane.b32.xlu0 %v562, 64
    %v1061 = vpop.permute.xlu0 %1060
    %v1062 = vsel %vm480, %v1055, 0
    %v1064 = vsel %vm480, %v1057, 0
    %v1066 = vsel %vm480, %v1059, 0
    %v1068 = vsel %vm480, %v1061, 0
    %1070 = vmatprep.subr.mxu0 0.0
    %1071 = vmatpush1.msra.mxu0 0.0
    %1072 = vmatprep.subr.mxu0 0.0
    %1073 = vmatpush1.msra.mxu0 0.0
    %1074 = vmatprep.subr.mxu0 0.0
    %1075 = vmatpush1.msra.mxu0 0.0
    %1076 = vmatprep.subr.mxu0 0.0
    %1077 = vmatpush1.msra.mxu0 0.0
    %1078 = vmatprep.subr.mxu0 0.0
    %1079 = vmatpush1.msra.mxu0 0.0
    %1080 = vmatprep.subr.mxu0 0.0
    %1081 = vmatpush1.msra.mxu0 0.0
    %1082 = vmatprep.subr.mxu0 0.0
    %1083 = vmatpush1.msra.mxu0 0.0
    %1084 = vmatprep.subr.mxu0 0.0
    %1085 = vmatpush1.msra.mxu0 0.0
    %1086 = vmatprep.subr.mxu0 0.0
    %1087 = vmatpush1.msra.mxu0 0.0
    %1088 = vmatprep.subr.mxu0 0.0
    %1089 = vmatpush1.msra.mxu0 0.0
    %1090 = vmatprep.subr.mxu0 0.0
    %1091 = vmatpush1.msra.mxu0 0.0
    %1092 = vmatprep.subr.mxu0 0.0
    %1093 = vmatpush1.msra.mxu0 0.0
    %1094 = vmatprep.subr.mxu0 0.0
    %1095 = vmatpush1.msra.mxu0 %v574
    %1096 = vmatprep.subr.mxu0 0.0
    %1097 = vmatpush1.msra.mxu0 %v573
    %1098 = vmatprep.subr.mxu0 0.0
    %1099 = vmatpush1.msra.mxu0 %v572
    %1100 = vmatprep.subr.mxu0 0.0
    %1101 = vmatpush1.msra.mxu0 %v571
    %1102 = vmatprep.subr.mxu0 0.0
    %1103 = vmatpush2.msra.mxu0 0.0
    %1104 = vmatprep.subr.mxu0 0.0
    %1105 = vmatpush2.msra.mxu0 0.0
    %1106 = vmatprep.subr.mxu0 0.0
    %1107 = vmatpush2.msra.mxu0 0.0
    %1108 = vmatprep.subr.mxu0 0.0
    %1109 = vmatpush2.msra.mxu0 0.0
    %1110 = vmatprep.subr.mxu0 0.0
    %1111 = vmatpush2.msra.mxu0 0.0
    %1112 = vmatprep.subr.mxu0 0.0
    %1113 = vmatpush2.msra.mxu0 0.0
    %1114 = vmatprep.subr.mxu0 0.0
    %1115 = vmatpush2.msra.mxu0 0.0
    %1116 = vmatprep.subr.mxu0 0.0
    %1117 = vmatpush2.msra.mxu0 0.0
    %1118 = vmatprep.subr.mxu0 0.0
    %1119 = vmatpush2.msra.mxu0 0.0
    %1120 = vmatprep.subr.mxu0 0.0
    %1121 = vmatpush2.msra.mxu0 0.0
    %1122 = vmatprep.subr.mxu0 0.0
    %1123 = vmatpush2.msra.mxu0 0.0
    %1124 = vmatprep.subr.mxu0 0.0
    %1125 = vmatpush2.msra.mxu0 0.0
    %1126 = vmatprep.subr.mxu0 0.0
    %1127 = vmatpush2.msra.mxu0 0.0
    %1128 = vmatprep.subr.mxu0 0.0
    %1129 = vmatpush2.msra.mxu0 0.0
    %1130 = vmatprep.subr.mxu0 0.0
    %1131 = vmatpush2.msra.mxu0 0.0
    %1132 = vmatprep.subr.mxu0 0.0
    %1133 = vmatpush2.msra.mxu0 0.0
    %1134 = vmatprep.mubr.f32.mxu0 0.0
    %1135 = vmatmul.mubr.f32.gmra.mxu0 %v1062
    %v1136 = vpop.f32.mrf.mxu0
    %v1137 = vadd.f32 0.0, %v1136
    %v1138 = vpop.f32.mrf.mxu0
    %1139 = vmatprep.mubr.f32.mxu0 0.0
    %1140 = vmatmul.mubr.f32.gmra.mxu0 %v1064
    %v1141 = vpop.f32.mrf.mxu0
    %v1142 = vadd.f32 0.0, %v1141
    %v1143 = vpop.f32.mrf.mxu0
    %1144 = vmatprep.mubr.f32.mxu0 0.0
    %1145 = vmatmul.mubr.f32.gmra.mxu0 %v1066
    %v1146 = vpop.f32.mrf.mxu0
    %v1147 = vadd.f32 0.0, %v1146
    %v1148 = vpop.f32.mrf.mxu0
    %1149 = vmatprep.mubr.f32.mxu0 0.0
    %1150 = vmatmul.mubr.f32.gmra.mxu0 %v1068
    %v1151 = vpop.f32.mrf.mxu0
    %v1152 = vadd.f32 0.0, %v1151
    %v1153 = vpop.f32.mrf.mxu0
    %1154 = vdwg.mxu0
    %1155 = vrot.lane.b32.xlu0 %v528, 64
    %v1156 = vpop.permute.xlu0 %1155
    %1157 = vrot.lane.b32.xlu0 %v532, 64
    %v1158 = vpop.permute.xlu0 %1157
    %1159 = vrot.lane.b32.xlu0 %v538, 64
    %v1160 = vpop.permute.xlu0 %1159
    %1161 = vrot.lane.b32.xlu0 %v542, 64
    %v1162 = vpop.permute.xlu0 %1161
    %v1163 = vsel %vm480, %v1156, 0
    %v1165 = vsel %vm480, %v1158, 0
    %v1167 = vsel %vm480, %v1160, 0
    %v1169 = vsel %vm480, %v1162, 0
    %1171 = vmatprep.subr.mxu0 0.0
    %1172 = vmatpush1.msra.mxu0 0.0
    %1173 = vmatprep.subr.mxu0 0.0
    %1174 = vmatpush1.msra.mxu0 0.0
    %1175 = vmatprep.subr.mxu0 0.0
    %1176 = vmatpush1.msra.mxu0 0.0
    %1177 = vmatprep.subr.mxu0 0.0
    %1178 = vmatpush1.msra.mxu0 0.0
    %1179 = vmatprep.subr.mxu0 0.0
    %1180 = vmatpush1.msra.mxu0 0.0
    %1181 = vmatprep.subr.mxu0 0.0
    %1182 = vmatpush1.msra.mxu0 0.0
    %1183 = vmatprep.subr.mxu0 0.0
    %1184 = vmatpush1.msra.mxu0 0.0
    %1185 = vmatprep.subr.mxu0 0.0
    %1186 = vmatpush1.msra.mxu0 0.0
    %1187 = vmatprep.subr.mxu0 0.0
    %1188 = vmatpush1.msra.mxu0 0.0
    %1189 = vmatprep.subr.mxu0 0.0
    %1190 = vmatpush1.msra.mxu0 0.0
    %1191 = vmatprep.subr.mxu0 0.0
    %1192 = vmatpush1.msra.mxu0 0.0
    %1193 = vmatprep.subr.mxu0 0.0
    %1194 = vmatpush1.msra.mxu0 0.0
    %1195 = vmatprep.subr.mxu0 0.0
    %1196 = vmatpush1.msra.mxu0 %v569
    %1197 = vmatprep.subr.mxu0 0.0
    %1198 = vmatpush1.msra.mxu0 %v568
    %1199 = vmatprep.subr.mxu0 0.0
    %1200 = vmatpush1.msra.mxu0 %v567
    %1201 = vmatprep.subr.mxu0 0.0
    %1202 = vmatpush1.msra.mxu0 %v566
    %1203 = vmatprep.subr.mxu0 0.0
    %1204 = vmatpush2.msra.mxu0 0.0
    %1205 = vmatprep.subr.mxu0 0.0
    %1206 = vmatpush2.msra.mxu0 0.0
    %1207 = vmatprep.subr.mxu0 0.0
    %1208 = vmatpush2.msra.mxu0 0.0
    %1209 = vmatprep.subr.mxu0 0.0
    %1210 = vmatpush2.msra.mxu0 0.0
    %1211 = vmatprep.subr.mxu0 0.0
    %1212 = vmatpush2.msra.mxu0 0.0
    %1213 = vmatprep.subr.mxu0 0.0
    %1214 = vmatpush2.msra.mxu0 0.0
    %1215 = vmatprep.subr.mxu0 0.0
    %1216 = vmatpush2.msra.mxu0 0.0
    %1217 = vmatprep.subr.mxu0 0.0
    %1218 = vmatpush2.msra.mxu0 0.0
    %1219 = vmatprep.subr.mxu0 0.0
    %1220 = vmatpush2.msra.mxu0 0.0
    %1221 = vmatprep.subr.mxu0 0.0
    %1222 = vmatpush2.msra.mxu0 0.0
    %1223 = vmatprep.subr.mxu0 0.0
    %1224 = vmatpush2.msra.mxu0 0.0
    %1225 = vmatprep.subr.mxu0 0.0
    %1226 = vmatpush2.msra.mxu0 0.0
    %1227 = vmatprep.subr.mxu0 0.0
    %1228 = vmatpush2.msra.mxu0 0.0
    %1229 = vmatprep.subr.mxu0 0.0
    %1230 = vmatpush2.msra.mxu0 0.0
    %1231 = vmatprep.subr.mxu0 0.0
    %1232 = vmatpush2.msra.mxu0 0.0
    %1233 = vmatprep.subr.mxu0 0.0
    %1234 = vmatpush2.msra.mxu0 0.0
    %1235 = vmatprep.mubr.f32.mxu0 0.0
    %1236 = vmatmul.mubr.f32.gmra.mxu0 %v1163
    %v1237 = vpop.f32.mrf.mxu0
    %v1238 = vadd.f32 %v1137, %v1237
    %v1239 = vpop.f32.mrf.mxu0
    %1240 = vmatprep.mubr.f32.mxu0 0.0
    %1241 = vmatmul.mubr.f32.gmra.mxu0 %v1165
    %v1242 = vpop.f32.mrf.mxu0
    %v1243 = vadd.f32 %v1142, %v1242
    %v1244 = vpop.f32.mrf.mxu0
    %1245 = vmatprep.mubr.f32.mxu0 0.0
    %1246 = vmatmul.mubr.f32.gmra.mxu0 %v1167
    %v1247 = vpop.f32.mrf.mxu0
    %v1248 = vadd.f32 %v1147, %v1247
    %v1249 = vpop.f32.mrf.mxu0
    %1250 = vmatprep.mubr.f32.mxu0 0.0
    %1251 = vmatmul.mubr.f32.gmra.mxu0 %v1169
    %v1252 = vpop.f32.mrf.mxu0
    %v1253 = vadd.f32 %v1152, %v1252
    %v1254 = vpop.f32.mrf.mxu0
    %1255 = vdwg.mxu0
    %v1256 = vadd.f32 %v1238, %v582
    %v1257 = vadd.f32 %v1243, %v587
    %v1258 = vadd.f32 %v1248, %v592
    %v1259 = vadd.f32 %v1253, %v597
    %1260 = vst.msk [vmem:[#allocation5 + $0x10] sm:$0xff] %vm480, %v1256
    %1261 = vst.msk [vmem:[#allocation5 + $0x30] sm:$0xff] %vm480, %v1257
    %1262 = vst.msk [vmem:[#allocation5 + $0x50] sm:$0xff] %vm480, %v1258
    %1263 = vst.msk [vmem:[#allocation5 + $0x70] sm:$0xff] %vm480, %v1259
    %1264 = vrot.lane.b32.xlu0 %v548, 32
    %v1265 = vpop.permute.xlu0 %1264
    %1266 = vrot.lane.b32.xlu0 %v552, 32
    %v1267 = vpop.permute.xlu0 %1266
    %1268 = vrot.lane.b32.xlu0 %v558, 32
    %v1269 = vpop.permute.xlu0 %1268
    %1270 = vrot.lane.b32.xlu0 %v562, 32
    %v1271 = vpop.permute.xlu0 %1270
    %v1272 = vsel %vm480, %v1265, 0
    %v1274 = vsel %vm480, %v1267, 0
    %v1276 = vsel %vm480, %v1269, 0
    %v1278 = vsel %vm480, %v1271, 0
    %1280 = vmatprep.subr.mxu0 0.0
    %1281 = vmatpush1.msra.mxu0 0.0
    %1282 = vmatprep.subr.mxu0 0.0
    %1283 = vmatpush1.msra.mxu0 0.0
    %1284 = vmatprep.subr.mxu0 0.0
    %1285 = vmatpush1.msra.mxu0 0.0
    %1286 = vmatprep.subr.mxu0 0.0
    %1287 = vmatpush1.msra.mxu0 0.0
    %1288 = vmatprep.subr.mxu0 0.0
    %1289 = vmatpush1.msra.mxu0 0.0
    %1290 = vmatprep.subr.mxu0 0.0
    %1291 = vmatpush1.msra.mxu0 0.0
    %1292 = vmatprep.subr.mxu0 0.0
    %1293 = vmatpush1.msra.mxu0 0.0
    %1294 = vmatprep.subr.mxu0 0.0
    %1295 = vmatpush1.msra.mxu0 0.0
    %1296 = vmatprep.subr.mxu0 0.0
    %1297 = vmatpush1.msra.mxu0 0.0
    %1298 = vmatprep.subr.mxu0 0.0
    %1299 = vmatpush1.msra.mxu0 0.0
    %1300 = vmatprep.subr.mxu0 0.0
    %1301 = vmatpush1.msra.mxu0 0.0
    %1302 = vmatprep.subr.mxu0 0.0
    %1303 = vmatpush1.msra.mxu0 0.0
    %1304 = vmatprep.subr.mxu0 0.0
    %1305 = vmatpush1.msra.mxu0 %v574
    %1306 = vmatprep.subr.mxu0 0.0
    %1307 = vmatpush1.msra.mxu0 %v573
    %1308 = vmatprep.subr.mxu0 0.0
    %1309 = vmatpush1.msra.mxu0 %v572
    %1310 = vmatprep.subr.mxu0 0.0
    %1311 = vmatpush1.msra.mxu0 %v571
    %1312 = vmatprep.subr.mxu0 0.0
    %1313 = vmatpush2.msra.mxu0 0.0
    %1314 = vmatprep.subr.mxu0 0.0
    %1315 = vmatpush2.msra.mxu0 0.0
    %1316 = vmatprep.subr.mxu0 0.0
    %1317 = vmatpush2.msra.mxu0 0.0
    %1318 = vmatprep.subr.mxu0 0.0
    %1319 = vmatpush2.msra.mxu0 0.0
    %1320 = vmatprep.subr.mxu0 0.0
    %1321 = vmatpush2.msra.mxu0 0.0
    %1322 = vmatprep.subr.mxu0 0.0
    %1323 = vmatpush2.msra.mxu0 0.0
    %1324 = vmatprep.subr.mxu0 0.0
    %1325 = vmatpush2.msra.mxu0 0.0
    %1326 = vmatprep.subr.mxu0 0.0
    %1327 = vmatpush2.msra.mxu0 0.0
    %1328 = vmatprep.subr.mxu0 0.0
    %1329 = vmatpush2.msra.mxu0 0.0
    %1330 = vmatprep.subr.mxu0 0.0
    %1331 = vmatpush2.msra.mxu0 0.0
    %1332 = vmatprep.subr.mxu0 0.0
    %1333 = vmatpush2.msra.mxu0 0.0
    %1334 = vmatprep.subr.mxu0 0.0
    %1335 = vmatpush2.msra.mxu0 0.0
    %1336 = vmatprep.subr.mxu0 0.0
    %1337 = vmatpush2.msra.mxu0 0.0
    %1338 = vmatprep.subr.mxu0 0.0
    %1339 = vmatpush2.msra.mxu0 0.0
    %1340 = vmatprep.subr.mxu0 0.0
    %1341 = vmatpush2.msra.mxu0 0.0
    %1342 = vmatprep.subr.mxu0 0.0
    %1343 = vmatpush2.msra.mxu0 0.0
    %1344 = vmatprep.mubr.f32.mxu0 0.0
    %1345 = vmatmul.mubr.f32.gmra.mxu0 %v1272
    %v1346 = vpop.f32.mrf.mxu0
    %v1347 = vadd.f32 0.0, %v1346
    %v1348 = vpop.f32.mrf.mxu0
    %1349 = vmatprep.mubr.f32.mxu0 0.0
    %1350 = vmatmul.mubr.f32.gmra.mxu0 %v1274
    %v1351 = vpop.f32.mrf.mxu0
    %v1352 = vadd.f32 0.0, %v1351
    %v1353 = vpop.f32.mrf.mxu0
    %1354 = vmatprep.mubr.f32.mxu0 0.0
    %1355 = vmatmul.mubr.f32.gmra.mxu0 %v1276
    %v1356 = vpop.f32.mrf.mxu0
    %v1357 = vadd.f32 0.0, %v1356
    %v1358 = vpop.f32.mrf.mxu0
    %1359 = vmatprep.mubr.f32.mxu0 0.0
    %1360 = vmatmul.mubr.f32.gmra.mxu0 %v1278
    %v1361 = vpop.f32.mrf.mxu0
    %v1362 = vadd.f32 0.0, %v1361
    %v1363 = vpop.f32.mrf.mxu0
    %1364 = vdwg.mxu0
    %1365 = vrot.lane.b32.xlu0 %v528, 32
    %v1366 = vpop.permute.xlu0 %1365
    %1367 = vrot.lane.b32.xlu0 %v532, 32
    %v1368 = vpop.permute.xlu0 %1367
    %1369 = vrot.lane.b32.xlu0 %v538, 32
    %v1370 = vpop.permute.xlu0 %1369
    %1371 = vrot.lane.b32.xlu0 %v542, 32
    %v1372 = vpop.permute.xlu0 %1371
    %v1373 = vsel %vm480, %v1366, 0
    %v1375 = vsel %vm480, %v1368, 0
    %v1377 = vsel %vm480, %v1370, 0
    %v1379 = vsel %vm480, %v1372, 0
    %1381 = vmatprep.subr.mxu0 0.0
    %1382 = vmatpush1.msra.mxu0 0.0
    %1383 = vmatprep.subr.mxu0 0.0
    %1384 = vmatpush1.msra.mxu0 0.0
    %1385 = vmatprep.subr.mxu0 0.0
    %1386 = vmatpush1.msra.mxu0 0.0
    %1387 = vmatprep.subr.mxu0 0.0
    %1388 = vmatpush1.msra.mxu0 0.0
    %1389 = vmatprep.subr.mxu0 0.0
    %1390 = vmatpush1.msra.mxu0 0.0
    %1391 = vmatprep.subr.mxu0 0.0
    %1392 = vmatpush1.msra.mxu0 0.0
    %1393 = vmatprep.subr.mxu0 0.0
    %1394 = vmatpush1.msra.mxu0 0.0
    %1395 = vmatprep.subr.mxu0 0.0
    %1396 = vmatpush1.msra.mxu0 0.0
    %1397 = vmatprep.subr.mxu0 0.0
    %1398 = vmatpush1.msra.mxu0 0.0
    %1399 = vmatprep.subr.mxu0 0.0
    %1400 = vmatpush1.msra.mxu0 0.0
    %1401 = vmatprep.subr.mxu0 0.0
    %1402 = vmatpush1.msra.mxu0 0.0
    %1403 = vmatprep.subr.mxu0 0.0
    %1404 = vmatpush1.msra.mxu0 0.0
    %1405 = vmatprep.subr.mxu0 0.0
    %1406 = vmatpush1.msra.mxu0 %v569
    %1407 = vmatprep.subr.mxu0 0.0
    %1408 = vmatpush1.msra.mxu0 %v568
    %1409 = vmatprep.subr.mxu0 0.0
    %1410 = vmatpush1.msra.mxu0 %v567
    %1411 = vmatprep.subr.mxu0 0.0
    %1412 = vmatpush1.msra.mxu0 %v566
    %1413 = vmatprep.subr.mxu0 0.0
    %1414 = vmatpush2.msra.mxu0 0.0
    %1415 = vmatprep.subr.mxu0 0.0
    %1416 = vmatpush2.msra.mxu0 0.0
    %1417 = vmatprep.subr.mxu0 0.0
    %1418 = vmatpush2.msra.mxu0 0.0
    %1419 = vmatprep.subr.mxu0 0.0
    %1420 = vmatpush2.msra.mxu0 0.0
    %1421 = vmatprep.subr.mxu0 0.0
    %1422 = vmatpush2.msra.mxu0 0.0
    %1423 = vmatprep.subr.mxu0 0.0
    %1424 = vmatpush2.msra.mxu0 0.0
    %1425 = vmatprep.subr.mxu0 0.0
    %1426 = vmatpush2.msra.mxu0 0.0
    %1427 = vmatprep.subr.mxu0 0.0
    %1428 = vmatpush2.msra.mxu0 0.0
    %1429 = vmatprep.subr.mxu0 0.0
    %1430 = vmatpush2.msra.mxu0 0.0
    %1431 = vmatprep.subr.mxu0 0.0
    %1432 = vmatpush2.msra.mxu0 0.0
    %1433 = vmatprep.subr.mxu0 0.0
    %1434 = vmatpush2.msra.mxu0 0.0
    %1435 = vmatprep.subr.mxu0 0.0
    %1436 = vmatpush2.msra.mxu0 0.0
    %1437 = vmatprep.subr.mxu0 0.0
    %1438 = vmatpush2.msra.mxu0 0.0
    %1439 = vmatprep.subr.mxu0 0.0
    %1440 = vmatpush2.msra.mxu0 0.0
    %1441 = vmatprep.subr.mxu0 0.0
    %1442 = vmatpush2.msra.mxu0 0.0
    %1443 = vmatprep.subr.mxu0 0.0
    %1444 = vmatpush2.msra.mxu0 0.0
    %1445 = vmatprep.mubr.f32.mxu0 0.0
    %1446 = vmatmul.mubr.f32.gmra.mxu0 %v1373
    %v1447 = vpop.f32.mrf.mxu0
    %v1448 = vadd.f32 %v1347, %v1447
    %v1449 = vpop.f32.mrf.mxu0
    %1450 = vmatprep.mubr.f32.mxu0 0.0
    %1451 = vmatmul.mubr.f32.gmra.mxu0 %v1375
    %v1452 = vpop.f32.mrf.mxu0
    %v1453 = vadd.f32 %v1352, %v1452
    %v1454 = vpop.f32.mrf.mxu0
    %1455 = vmatprep.mubr.f32.mxu0 0.0
    %1456 = vmatmul.mubr.f32.gmra.mxu0 %v1377
    %v1457 = vpop.f32.mrf.mxu0
    %v1458 = vadd.f32 %v1357, %v1457
    %v1459 = vpop.f32.mrf.mxu0
    %1460 = vmatprep.mubr.f32.mxu0 0.0
    %1461 = vmatmul.mubr.f32.gmra.mxu0 %v1379
    %v1462 = vpop.f32.mrf.mxu0
    %v1463 = vadd.f32 %v1362, %v1462
    %v1464 = vpop.f32.mrf.mxu0
    %1465 = vdwg.mxu0
    %v1466 = vadd.f32 %v1448, %v582
    %v1467 = vadd.f32 %v1453, %v587
    %v1468 = vadd.f32 %v1458, %v592
    %v1469 = vadd.f32 %v1463, %v597
    %1474 = vrot.lane.b32.xlu0 %v1466, 32
    %v1475 = vpop.permute.xlu0 %1474
    %1476 = vrot.lane.b32.xlu0 %v1467, 32
    %v1477 = vpop.permute.xlu0 %1476
    %1478 = vrot.lane.b32.xlu0 %v1468, 32
    %v1479 = vpop.permute.xlu0 %1478
    %1480 = vrot.lane.b32.xlu0 %v1469, 32
    %v1481 = vpop.permute.xlu0 %1480
    %vm1486 = vcmask 523520
    %1487 = vst.msk [vmem:[#allocation5 + $0x10] sm:$0xff] %vm1486, %v1475
    %1488 = vst.msk [vmem:[#allocation5 + $0x30] sm:$0xff] %vm1486, %v1477
    %1489 = vst.msk [vmem:[#allocation5 + $0x50] sm:$0xff] %vm1486, %v1479
    %1490 = vst.msk [vmem:[#allocation5 + $0x70] sm:$0xff] %vm1486, %v1481
    %v1492 = vsel %vm480, %v550, 0
    %v1495 = vsel %vm480, %v554, 0
    %v1498 = vsel %vm480, %v560, 0
    %v1501 = vsel %vm480, %v564, 0
    %1503 = vmatprep.subr.mxu0 0.0
    %1504 = vmatpush1.msra.mxu0 0.0
    %1505 = vmatprep.subr.mxu0 0.0
    %1506 = vmatpush1.msra.mxu0 0.0
    %1507 = vmatprep.subr.mxu0 0.0
    %1508 = vmatpush1.msra.mxu0 0.0
    %1509 = vmatprep.subr.mxu0 0.0
    %1510 = vmatpush1.msra.mxu0 0.0
    %1511 = vmatprep.subr.mxu0 0.0
    %1512 = vmatpush1.msra.mxu0 0.0
    %1513 = vmatprep.subr.mxu0 0.0
    %1514 = vmatpush1.msra.mxu0 0.0
    %1515 = vmatprep.subr.mxu0 0.0
    %1516 = vmatpush1.msra.mxu0 0.0
    %1517 = vmatprep.subr.mxu0 0.0
    %1518 = vmatpush1.msra.mxu0 0.0
    %1519 = vmatprep.subr.mxu0 0.0
    %1520 = vmatpush1.msra.mxu0 0.0
    %1521 = vmatprep.subr.mxu0 0.0
    %1522 = vmatpush1.msra.mxu0 0.0
    %1523 = vmatprep.subr.mxu0 0.0
    %1524 = vmatpush1.msra.mxu0 0.0
    %1525 = vmatprep.subr.mxu0 0.0
    %1526 = vmatpush1.msra.mxu0 0.0
    %1527 = vmatprep.subr.mxu0 0.0
    %1528 = vmatpush1.msra.mxu0 %v574
    %1529 = vmatprep.subr.mxu0 0.0
    %1530 = vmatpush1.msra.mxu0 %v573
    %1531 = vmatprep.subr.mxu0 0.0
    %1532 = vmatpush1.msra.mxu0 %v572
    %1533 = vmatprep.subr.mxu0 0.0
    %1534 = vmatpush1.msra.mxu0 %v571
    %1535 = vmatprep.subr.mxu0 0.0
    %1536 = vmatpush2.msra.mxu0 0.0
    %1537 = vmatprep.subr.mxu0 0.0
    %1538 = vmatpush2.msra.mxu0 0.0
    %1539 = vmatprep.subr.mxu0 0.0
    %1540 = vmatpush2.msra.mxu0 0.0
    %1541 = vmatprep.subr.mxu0 0.0
    %1542 = vmatpush2.msra.mxu0 0.0
    %1543 = vmatprep.subr.mxu0 0.0
    %1544 = vmatpush2.msra.mxu0 0.0
    %1545 = vmatprep.subr.mxu0 0.0
    %1546 = vmatpush2.msra.mxu0 0.0
    %1547 = vmatprep.subr.mxu0 0.0
    %1548 = vmatpush2.msra.mxu0 0.0
    %1549 = vmatprep.subr.mxu0 0.0
    %1550 = vmatpush2.msra.mxu0 0.0
    %1551 = vmatprep.subr.mxu0 0.0
    %1552 = vmatpush2.msra.mxu0 0.0
    %1553 = vmatprep.subr.mxu0 0.0
    %1554 = vmatpush2.msra.mxu0 0.0
    %1555 = vmatprep.subr.mxu0 0.0
    %1556 = vmatpush2.msra.mxu0 0.0
    %1557 = vmatprep.subr.mxu0 0.0
    %1558 = vmatpush2.msra.mxu0 0.0
    %1559 = vmatprep.subr.mxu0 0.0
    %1560 = vmatpush2.msra.mxu0 0.0
    %1561 = vmatprep.subr.mxu0 0.0
    %1562 = vmatpush2.msra.mxu0 0.0
    %1563 = vmatprep.subr.mxu0 0.0
    %1564 = vmatpush2.msra.mxu0 0.0
    %1565 = vmatprep.subr.mxu0 0.0
    %1566 = vmatpush2.msra.mxu0 0.0
    %1567 = vmatprep.mubr.f32.mxu0 0.0
    %1568 = vmatmul.mubr.f32.gmra.mxu0 %v1492
    %v1569 = vpop.f32.mrf.mxu0
    %v1570 = vadd.f32 0.0, %v1569
    %v1571 = vpop.f32.mrf.mxu0
    %1572 = vmatprep.mubr.f32.mxu0 0.0
    %1573 = vmatmul.mubr.f32.gmra.mxu0 %v1495
    %v1574 = vpop.f32.mrf.mxu0
    %v1575 = vadd.f32 0.0, %v1574
    %v1576 = vpop.f32.mrf.mxu0
    %1577 = vmatprep.mubr.f32.mxu0 0.0
    %1578 = vmatmul.mubr.f32.gmra.mxu0 %v1498
    %v1579 = vpop.f32.mrf.mxu0
    %v1580 = vadd.f32 0.0, %v1579
    %v1581 = vpop.f32.mrf.mxu0
    %1582 = vmatprep.mubr.f32.mxu0 0.0
    %1583 = vmatmul.mubr.f32.gmra.mxu0 %v1501
    %v1584 = vpop.f32.mrf.mxu0
    %v1585 = vadd.f32 0.0, %v1584
    %v1586 = vpop.f32.mrf.mxu0
    %1587 = vdwg.mxu0
    %v1589 = vsel %vm480, %v530, 0
    %v1592 = vsel %vm480, %v534, 0
    %v1595 = vsel %vm480, %v540, 0
    %v1598 = vsel %vm480, %v544, 0
    %1600 = vmatprep.subr.mxu0 0.0
    %1601 = vmatpush1.msra.mxu0 0.0
    %1602 = vmatprep.subr.mxu0 0.0
    %1603 = vmatpush1.msra.mxu0 0.0
    %1604 = vmatprep.subr.mxu0 0.0
    %1605 = vmatpush1.msra.mxu0 0.0
    %1606 = vmatprep.subr.mxu0 0.0
    %1607 = vmatpush1.msra.mxu0 0.0
    %1608 = vmatprep.subr.mxu0 0.0
    %1609 = vmatpush1.msra.mxu0 0.0
    %1610 = vmatprep.subr.mxu0 0.0
    %1611 = vmatpush1.msra.mxu0 0.0
    %1612 = vmatprep.subr.mxu0 0.0
    %1613 = vmatpush1.msra.mxu0 0.0
    %1614 = vmatprep.subr.mxu0 0.0
    %1615 = vmatpush1.msra.mxu0 0.0
    %1616 = vmatprep.subr.mxu0 0.0
    %1617 = vmatpush1.msra.mxu0 0.0
    %1618 = vmatprep.subr.mxu0 0.0
    %1619 = vmatpush1.msra.mxu0 0.0
    %1620 = vmatprep.subr.mxu0 0.0
    %1621 = vmatpush1.msra.mxu0 0.0
    %1622 = vmatprep.subr.mxu0 0.0
    %1623 = vmatpush1.msra.mxu0 0.0
    %1624 = vmatprep.subr.mxu0 0.0
    %1625 = vmatpush1.msra.mxu0 %v569
    %1626 = vmatprep.subr.mxu0 0.0
    %1627 = vmatpush1.msra.mxu0 %v568
    %1628 = vmatprep.subr.mxu0 0.0
    %1629 = vmatpush1.msra.mxu0 %v567
    %1630 = vmatprep.subr.mxu0 0.0
    %1631 = vmatpush1.msra.mxu0 %v566
    %1632 = vmatprep.subr.mxu0 0.0
    %1633 = vmatpush2.msra.mxu0 0.0
    %1634 = vmatprep.subr.mxu0 0.0
    %1635 = vmatpush2.msra.mxu0 0.0
    %1636 = vmatprep.subr.mxu0 0.0
    %1637 = vmatpush2.msra.mxu0 0.0
    %1638 = vmatprep.subr.mxu0 0.0
    %1639 = vmatpush2.msra.mxu0 0.0
    %1640 = vmatprep.subr.mxu0 0.0
    %1641 = vmatpush2.msra.mxu0 0.0
    %1642 = vmatprep.subr.mxu0 0.0
    %1643 = vmatpush2.msra.mxu0 0.0
    %1644 = vmatprep.subr.mxu0 0.0
    %1645 = vmatpush2.msra.mxu0 0.0
    %1646 = vmatprep.subr.mxu0 0.0
    %1647 = vmatpush2.msra.mxu0 0.0
    %1648 = vmatprep.subr.mxu0 0.0
    %1649 = vmatpush2.msra.mxu0 0.0
    %1650 = vmatprep.subr.mxu0 0.0
    %1651 = vmatpush2.msra.mxu0 0.0
    %1652 = vmatprep.subr.mxu0 0.0
    %1653 = vmatpush2.msra.mxu0 0.0
    %1654 = vmatprep.subr.mxu0 0.0
    %1655 = vmatpush2.msra.mxu0 0.0
    %1656 = vmatprep.subr.mxu0 0.0
    %1657 = vmatpush2.msra.mxu0 0.0
    %1658 = vmatprep.subr.mxu0 0.0
    %1659 = vmatpush2.msra.mxu0 0.0
    %1660 = vmatprep.subr.mxu0 0.0
    %1661 = vmatpush2.msra.mxu0 0.0
    %1662 = vmatprep.subr.mxu0 0.0
    %1663 = vmatpush2.msra.mxu0 0.0
    %1664 = vmatprep.mubr.f32.mxu0 0.0
    %1665 = vmatmul.mubr.f32.gmra.mxu0 %v1589
    %v1666 = vpop.f32.mrf.mxu0
    %v1667 = vadd.f32 %v1570, %v1666
    %v1668 = vpop.f32.mrf.mxu0
    %1669 = vmatprep.mubr.f32.mxu0 0.0
    %1670 = vmatmul.mubr.f32.gmra.mxu0 %v1592
    %v1671 = vpop.f32.mrf.mxu0
    %v1672 = vadd.f32 %v1575, %v1671
    %v1673 = vpop.f32.mrf.mxu0
    %1674 = vmatprep.mubr.f32.mxu0 0.0
    %1675 = vmatmul.mubr.f32.gmra.mxu0 %v1595
    %v1676 = vpop.f32.mrf.mxu0
    %v1677 = vadd.f32 %v1580, %v1676
    %v1678 = vpop.f32.mrf.mxu0
    %1679 = vmatprep.mubr.f32.mxu0 0.0
    %1680 = vmatmul.mubr.f32.gmra.mxu0 %v1598
    %v1681 = vpop.f32.mrf.mxu0
    %v1682 = vadd.f32 %v1585, %v1681
    %v1683 = vpop.f32.mrf.mxu0
    %1684 = vdwg.mxu0
    %v1685 = vadd.f32 %v1667, %v582
    %v1686 = vadd.f32 %v1672, %v587
    %v1687 = vadd.f32 %v1677, %v592
    %v1688 = vadd.f32 %v1682, %v597
    %1693 = vrot.lane.b32.xlu0 %v1685, 64
    %v1694 = vpop.permute.xlu0 %1693
    %1695 = vrot.lane.b32.xlu0 %v1686, 64
    %v1696 = vpop.permute.xlu0 %1695
    %1697 = vrot.lane.b32.xlu0 %v1687, 64
    %v1698 = vpop.permute.xlu0 %1697
    %1699 = vrot.lane.b32.xlu0 %v1688, 64
    %v1700 = vpop.permute.xlu0 %1699
    %1705 = vst.msk [vmem:[#allocation5 + $0x10] sm:$0xff] %vm822, %v1694
    %1706 = vst.msk [vmem:[#allocation5 + $0x30] sm:$0xff] %vm822, %v1696
    %1707 = vst.msk [vmem:[#allocation5 + $0x50] sm:$0xff] %vm822, %v1698
    %1708 = vst.msk [vmem:[#allocation5 + $0x70] sm:$0xff] %vm822, %v1700
    %1709 = vrot.lane.b32.xlu0 %v550, 96
    %v1710 = vpop.permute.xlu0 %1709
    %1711 = vrot.lane.b32.xlu0 %v554, 96
    %v1712 = vpop.permute.xlu0 %1711
    %1713 = vrot.lane.b32.xlu0 %v560, 96
    %v1714 = vpop.permute.xlu0 %1713
    %1715 = vrot.lane.b32.xlu0 %v564, 96
    %v1716 = vpop.permute.xlu0 %1715
    %v1717 = vsel %vm480, %v1710, 0
    %v1719 = vsel %vm480, %v1712, 0
    %v1721 = vsel %vm480, %v1714, 0
    %v1723 = vsel %vm480, %v1716, 0
    %1725 = vmatprep.subr.mxu0 0.0
    %1726 = vmatpush1.msra.mxu0 0.0
    %1727 = vmatprep.subr.mxu0 0.0
    %1728 = vmatpush1.msra.mxu0 0.0
    %1729 = vmatprep.subr.mxu0 0.0
    %1730 = vmatpush1.msra.mxu0 0.0
    %1731 = vmatprep.subr.mxu0 0.0
    %1732 = vmatpush1.msra.mxu0 0.0
    %1733 = vmatprep.subr.mxu0 0.0
    %1734 = vmatpush1.msra.mxu0 0.0
    %1735 = vmatprep.subr.mxu0 0.0
    %1736 = vmatpush1.msra.mxu0 0.0
    %1737 = vmatprep.subr.mxu0 0.0
    %1738 = vmatpush1.msra.mxu0 0.0
    %1739 = vmatprep.subr.mxu0 0.0
    %1740 = vmatpush1.msra.mxu0 0.0
    %1741 = vmatprep.subr.mxu0 0.0
    %1742 = vmatpush1.msra.mxu0 0.0
    %1743 = vmatprep.subr.mxu0 0.0
    %1744 = vmatpush1.msra.mxu0 0.0
    %1745 = vmatprep.subr.mxu0 0.0
    %1746 = vmatpush1.msra.mxu0 0.0
    %1747 = vmatprep.subr.mxu0 0.0
    %1748 = vmatpush1.msra.mxu0 0.0
    %1749 = vmatprep.subr.mxu0 0.0
    %1750 = vmatpush1.msra.mxu0 %v574
    %1751 = vmatprep.subr.mxu0 0.0
    %1752 = vmatpush1.msra.mxu0 %v573
    %1753 = vmatprep.subr.mxu0 0.0
    %1754 = vmatpush1.msra.mxu0 %v572
    %1755 = vmatprep.subr.mxu0 0.0
    %1756 = vmatpush1.msra.mxu0 %v571
    %1757 = vmatprep.subr.mxu0 0.0
    %1758 = vmatpush2.msra.mxu0 0.0
    %1759 = vmatprep.subr.mxu0 0.0
    %1760 = vmatpush2.msra.mxu0 0.0
    %1761 = vmatprep.subr.mxu0 0.0
    %1762 = vmatpush2.msra.mxu0 0.0
    %1763 = vmatprep.subr.mxu0 0.0
    %1764 = vmatpush2.msra.mxu0 0.0
    %1765 = vmatprep.subr.mxu0 0.0
    %1766 = vmatpush2.msra.mxu0 0.0
    %1767 = vmatprep.subr.mxu0 0.0
    %1768 = vmatpush2.msra.mxu0 0.0
    %1769 = vmatprep.subr.mxu0 0.0
    %1770 = vmatpush2.msra.mxu0 0.0
    %1771 = vmatprep.subr.mxu0 0.0
    %1772 = vmatpush2.msra.mxu0 0.0
    %1773 = vmatprep.subr.mxu0 0.0
    %1774 = vmatpush2.msra.mxu0 0.0
    %1775 = vmatprep.subr.mxu0 0.0
    %1776 = vmatpush2.msra.mxu0 0.0
    %1777 = vmatprep.subr.mxu0 0.0
    %1778 = vmatpush2.msra.mxu0 0.0
    %1779 = vmatprep.subr.mxu0 0.0
    %1780 = vmatpush2.msra.mxu0 0.0
    %1781 = vmatprep.subr.mxu0 0.0
    %1782 = vmatpush2.msra.mxu0 0.0
    %1783 = vmatprep.subr.mxu0 0.0
    %1784 = vmatpush2.msra.mxu0 0.0
    %1785 = vmatprep.subr.mxu0 0.0
    %1786 = vmatpush2.msra.mxu0 0.0
    %1787 = vmatprep.subr.mxu0 0.0
    %1788 = vmatpush2.msra.mxu0 0.0
    %1789 = vmatprep.mubr.f32.mxu0 0.0
    %1790 = vmatmul.mubr.f32.gmra.mxu0 %v1717
    %v1791 = vpop.f32.mrf.mxu0
    %v1792 = vadd.f32 0.0, %v1791
    %v1793 = vpop.f32.mrf.mxu0
    %1794 = vmatprep.mubr.f32.mxu0 0.0
    %1795 = vmatmul.mubr.f32.gmra.mxu0 %v1719
    %v1796 = vpop.f32.mrf.mxu0
    %v1797 = vadd.f32 0.0, %v1796
    %v1798 = vpop.f32.mrf.mxu0
    %1799 = vmatprep.mubr.f32.mxu0 0.0
    %1800 = vmatmul.mubr.f32.gmra.mxu0 %v1721
    %v1801 = vpop.f32.mrf.mxu0
    %v1802 = vadd.f32 0.0, %v1801
    %v1803 = vpop.f32.mrf.mxu0
    %1804 = vmatprep.mubr.f32.mxu0 0.0
    %1805 = vmatmul.mubr.f32.gmra.mxu0 %v1723
    %v1806 = vpop.f32.mrf.mxu0
    %v1807 = vadd.f32 0.0, %v1806
    %v1808 = vpop.f32.mrf.mxu0
    %1809 = vdwg.mxu0
    %1810 = vrot.lane.b32.xlu0 %v530, 96
    %v1811 = vpop.permute.xlu0 %1810
    %1812 = vrot.lane.b32.xlu0 %v534, 96
    %v1813 = vpop.permute.xlu0 %1812
    %1814 = vrot.lane.b32.xlu0 %v540, 96
    %v1815 = vpop.permute.xlu0 %1814
    %1816 = vrot.lane.b32.xlu0 %v544, 96
    %v1817 = vpop.permute.xlu0 %1816
    %v1818 = vsel %vm480, %v1811, 0
    %v1820 = vsel %vm480, %v1813, 0
    %v1822 = vsel %vm480, %v1815, 0
    %v1824 = vsel %vm480, %v1817, 0
    %1826 = vmatprep.subr.mxu0 0.0
    %1827 = vmatpush1.msra.mxu0 0.0
    %1828 = vmatprep.subr.mxu0 0.0
    %1829 = vmatpush1.msra.mxu0 0.0
    %1830 = vmatprep.subr.mxu0 0.0
    %1831 = vmatpush1.msra.mxu0 0.0
    %1832 = vmatprep.subr.mxu0 0.0
    %1833 = vmatpush1.msra.mxu0 0.0
    %1834 = vmatprep.subr.mxu0 0.0
    %1835 = vmatpush1.msra.mxu0 0.0
    %1836 = vmatprep.subr.mxu0 0.0
    %1837 = vmatpush1.msra.mxu0 0.0
    %1838 = vmatprep.subr.mxu0 0.0
    %1839 = vmatpush1.msra.mxu0 0.0
    %1840 = vmatprep.subr.mxu0 0.0
    %1841 = vmatpush1.msra.mxu0 0.0
    %1842 = vmatprep.subr.mxu0 0.0
    %1843 = vmatpush1.msra.mxu0 0.0
    %1844 = vmatprep.subr.mxu0 0.0
    %1845 = vmatpush1.msra.mxu0 0.0
    %1846 = vmatprep.subr.mxu0 0.0
    %1847 = vmatpush1.msra.mxu0 0.0
    %1848 = vmatprep.subr.mxu0 0.0
    %1849 = vmatpush1.msra.mxu0 0.0
    %1850 = vmatprep.subr.mxu0 0.0
    %1851 = vmatpush1.msra.mxu0 %v569
    %1852 = vmatprep.subr.mxu0 0.0
    %1853 = vmatpush1.msra.mxu0 %v568
    %1854 = vmatprep.subr.mxu0 0.0
    %1855 = vmatpush1.msra.mxu0 %v567
    %1856 = vmatprep.subr.mxu0 0.0
    %1857 = vmatpush1.msra.mxu0 %v566
    %1858 = vmatprep.subr.mxu0 0.0
    %1859 = vmatpush2.msra.mxu0 0.0
    %1860 = vmatprep.subr.mxu0 0.0
    %1861 = vmatpush2.msra.mxu0 0.0
    %1862 = vmatprep.subr.mxu0 0.0
    %1863 = vmatpush2.msra.mxu0 0.0
    %1864 = vmatprep.subr.mxu0 0.0
    %1865 = vmatpush2.msra.mxu0 0.0
    %1866 = vmatprep.subr.mxu0 0.0
    %1867 = vmatpush2.msra.mxu0 0.0
    %1868 = vmatprep.subr.mxu0 0.0
    %1869 = vmatpush2.msra.mxu0 0.0
    %1870 = vmatprep.subr.mxu0 0.0
    %1871 = vmatpush2.msra.mxu0 0.0
    %1872 = vmatprep.subr.mxu0 0.0
    %1873 = vmatpush2.msra.mxu0 0.0
    %1874 = vmatprep.subr.mxu0 0.0
    %1875 = vmatpush2.msra.mxu0 0.0
    %1876 = vmatprep.subr.mxu0 0.0
    %1877 = vmatpush2.msra.mxu0 0.0
    %1878 = vmatprep.subr.mxu0 0.0
    %1879 = vmatpush2.msra.mxu0 0.0
    %1880 = vmatprep.subr.mxu0 0.0
    %1881 = vmatpush2.msra.mxu0 0.0
    %1882 = vmatprep.subr.mxu0 0.0
    %1883 = vmatpush2.msra.mxu0 0.0
    %1884 = vmatprep.subr.mxu0 0.0
    %1885 = vmatpush2.msra.mxu0 0.0
    %1886 = vmatprep.subr.mxu0 0.0
    %1887 = vmatpush2.msra.mxu0 0.0
    %1888 = vmatprep.subr.mxu0 0.0
    %1889 = vmatpush2.msra.mxu0 0.0
    %1890 = vmatprep.mubr.f32.mxu0 0.0
    %1891 = vmatmul.mubr.f32.gmra.mxu0 %v1818
    %v1892 = vpop.f32.mrf.mxu0
    %v1893 = vadd.f32 %v1792, %v1892
    %v1894 = vpop.f32.mrf.mxu0
    %1895 = vmatprep.mubr.f32.mxu0 0.0
    %1896 = vmatmul.mubr.f32.gmra.mxu0 %v1820
    %v1897 = vpop.f32.mrf.mxu0
    %v1898 = vadd.f32 %v1797, %v1897
    %v1899 = vpop.f32.mrf.mxu0
    %1900 = vmatprep.mubr.f32.mxu0 0.0
    %1901 = vmatmul.mubr.f32.gmra.mxu0 %v1822
    %v1902 = vpop.f32.mrf.mxu0
    %v1903 = vadd.f32 %v1802, %v1902
    %v1904 = vpop.f32.mrf.mxu0
    %1905 = vmatprep.mubr.f32.mxu0 0.0
    %1906 = vmatmul.mubr.f32.gmra.mxu0 %v1824
    %v1907 = vpop.f32.mrf.mxu0
    %v1908 = vadd.f32 %v1807, %v1907
    %v1909 = vpop.f32.mrf.mxu0
    %1910 = vdwg.mxu0
    %v1911 = vadd.f32 %v1893, %v582
    %v1912 = vadd.f32 %v1898, %v587
    %v1913 = vadd.f32 %v1903, %v592
    %v1914 = vadd.f32 %v1908, %v597
    %1919 = vrot.lane.b32.xlu0 %v1911, 96
    %v1920 = vpop.permute.xlu0 %1919
    %1921 = vrot.lane.b32.xlu0 %v1912, 96
    %v1922 = vpop.permute.xlu0 %1921
    %1923 = vrot.lane.b32.xlu0 %v1913, 96
    %v1924 = vpop.permute.xlu0 %1923
    %1925 = vrot.lane.b32.xlu0 %v1914, 96
    %v1926 = vpop.permute.xlu0 %1925
    %1931 = vst.msk [vmem:[#allocation5 + $0x10] sm:$0xff] %vm1049, %v1920
    %1932 = vst.msk [vmem:[#allocation5 + $0x30] sm:$0xff] %vm1049, %v1922
    %1933 = vst.msk [vmem:[#allocation5 + $0x50] sm:$0xff] %vm1049, %v1924
    %1934 = vst.msk [vmem:[#allocation5 + $0x70] sm:$0xff] %vm1049, %v1926
    %1935 = vrot.lane.b32.xlu0 %v550, 64
    %v1936 = vpop.permute.xlu0 %1935
    %1937 = vrot.lane.b32.xlu0 %v554, 64
    %v1938 = vpop.permute.xlu0 %1937
    %1939 = vrot.lane.b32.xlu0 %v560, 64
    %v1940 = vpop.permute.xlu0 %1939
    %1941 = vrot.lane.b32.xlu0 %v564, 64
    %v1942 = vpop.permute.xlu0 %1941
    %v1943 = vsel %vm480, %v1936, 0
    %v1945 = vsel %vm480, %v1938, 0
    %v1947 = vsel %vm480, %v1940, 0
    %v1949 = vsel %vm480, %v1942, 0
    %1951 = vmatprep.subr.mxu0 0.0
    %1952 = vmatpush1.msra.mxu0 0.0
    %1953 = vmatprep.subr.mxu0 0.0
    %1954 = vmatpush1.msra.mxu0 0.0
    %1955 = vmatprep.subr.mxu0 0.0
    %1956 = vmatpush1.msra.mxu0 0.0
    %1957 = vmatprep.subr.mxu0 0.0
    %1958 = vmatpush1.msra.mxu0 0.0
    %1959 = vmatprep.subr.mxu0 0.0
    %1960 = vmatpush1.msra.mxu0 0.0
    %1961 = vmatprep.subr.mxu0 0.0
    %1962 = vmatpush1.msra.mxu0 0.0
    %1963 = vmatprep.subr.mxu0 0.0
    %1964 = vmatpush1.msra.mxu0 0.0
    %1965 = vmatprep.subr.mxu0 0.0
    %1966 = vmatpush1.msra.mxu0 0.0
    %1967 = vmatprep.subr.mxu0 0.0
    %1968 = vmatpush1.msra.mxu0 0.0
    %1969 = vmatprep.subr.mxu0 0.0
    %1970 = vmatpush1.msra.mxu0 0.0
    %1971 = vmatprep.subr.mxu0 0.0
    %1972 = vmatpush1.msra.mxu0 0.0
    %1973 = vmatprep.subr.mxu0 0.0
    %1974 = vmatpush1.msra.mxu0 0.0
    %1975 = vmatprep.subr.mxu0 0.0
    %1976 = vmatpush1.msra.mxu0 %v574
    %1977 = vmatprep.subr.mxu0 0.0
    %1978 = vmatpush1.msra.mxu0 %v573
    %1979 = vmatprep.subr.mxu0 0.0
    %1980 = vmatpush1.msra.mxu0 %v572
    %1981 = vmatprep.subr.mxu0 0.0
    %1982 = vmatpush1.msra.mxu0 %v571
    %1983 = vmatprep.subr.mxu0 0.0
    %1984 = vmatpush2.msra.mxu0 0.0
    %1985 = vmatprep.subr.mxu0 0.0
    %1986 = vmatpush2.msra.mxu0 0.0
    %1987 = vmatprep.subr.mxu0 0.0
    %1988 = vmatpush2.msra.mxu0 0.0
    %1989 = vmatprep.subr.mxu0 0.0
    %1990 = vmatpush2.msra.mxu0 0.0
    %1991 = vmatprep.subr.mxu0 0.0
    %1992 = vmatpush2.msra.mxu0 0.0
    %1993 = vmatprep.subr.mxu0 0.0
    %1994 = vmatpush2.msra.mxu0 0.0
    %1995 = vmatprep.subr.mxu0 0.0
    %1996 = vmatpush2.msra.mxu0 0.0
    %1997 = vmatprep.subr.mxu0 0.0
    %1998 = vmatpush2.msra.mxu0 0.0
    %1999 = vmatprep.subr.mxu0 0.0
    %2000 = vmatpush2.msra.mxu0 0.0
    %2001 = vmatprep.subr.mxu0 0.0
    %2002 = vmatpush2.msra.mxu0 0.0
    %2003 = vmatprep.subr.mxu0 0.0
    %2004 = vmatpush2.msra.mxu0 0.0
    %2005 = vmatprep.subr.mxu0 0.0
    %2006 = vmatpush2.msra.mxu0 0.0
    %2007 = vmatprep.subr.mxu0 0.0
    %2008 = vmatpush2.msra.mxu0 0.0
    %2009 = vmatprep.subr.mxu0 0.0
    %2010 = vmatpush2.msra.mxu0 0.0
    %2011 = vmatprep.subr.mxu0 0.0
    %2012 = vmatpush2.msra.mxu0 0.0
    %2013 = vmatprep.subr.mxu0 0.0
    %2014 = vmatpush2.msra.mxu0 0.0
    %2015 = vmatprep.mubr.f32.mxu0 0.0
    %2016 = vmatmul.mubr.f32.gmra.mxu0 %v1943
    %v2017 = vpop.f32.mrf.mxu0
    %v2018 = vadd.f32 0.0, %v2017
    %v2019 = vpop.f32.mrf.mxu0
    %2020 = vmatprep.mubr.f32.mxu0 0.0
    %2021 = vmatmul.mubr.f32.gmra.mxu0 %v1945
    %v2022 = vpop.f32.mrf.mxu0
    %v2023 = vadd.f32 0.0, %v2022
    %v2024 = vpop.f32.mrf.mxu0
    %2025 = vmatprep.mubr.f32.mxu0 0.0
    %2026 = vmatmul.mubr.f32.gmra.mxu0 %v1947
    %v2027 = vpop.f32.mrf.mxu0
    %v2028 = vadd.f32 0.0, %v2027
    %v2029 = vpop.f32.mrf.mxu0
    %2030 = vmatprep.mubr.f32.mxu0 0.0
    %2031 = vmatmul.mubr.f32.gmra.mxu0 %v1949
    %v2032 = vpop.f32.mrf.mxu0
    %v2033 = vadd.f32 0.0, %v2032
    %v2034 = vpop.f32.mrf.mxu0
    %2035 = vdwg.mxu0
    %2036 = vrot.lane.b32.xlu0 %v530, 64
    %v2037 = vpop.permute.xlu0 %2036
    %2038 = vrot.lane.b32.xlu0 %v534, 64
    %v2039 = vpop.permute.xlu0 %2038
    %2040 = vrot.lane.b32.xlu0 %v540, 64
    %v2041 = vpop.permute.xlu0 %2040
    %2042 = vrot.lane.b32.xlu0 %v544, 64
    %v2043 = vpop.permute.xlu0 %2042
    %v2044 = vsel %vm480, %v2037, 0
    %v2046 = vsel %vm480, %v2039, 0
    %v2048 = vsel %vm480, %v2041, 0
    %v2050 = vsel %vm480, %v2043, 0
    %2052 = vmatprep.subr.mxu0 0.0
    %2053 = vmatpush1.msra.mxu0 0.0
    %2054 = vmatprep.subr.mxu0 0.0
    %2055 = vmatpush1.msra.mxu0 0.0
    %2056 = vmatprep.subr.mxu0 0.0
    %2057 = vmatpush1.msra.mxu0 0.0
    %2058 = vmatprep.subr.mxu0 0.0
    %2059 = vmatpush1.msra.mxu0 0.0
    %2060 = vmatprep.subr.mxu0 0.0
    %2061 = vmatpush1.msra.mxu0 0.0
    %2062 = vmatprep.subr.mxu0 0.0
    %2063 = vmatpush1.msra.mxu0 0.0
    %2064 = vmatprep.subr.mxu0 0.0
    %2065 = vmatpush1.msra.mxu0 0.0
    %2066 = vmatprep.subr.mxu0 0.0
    %2067 = vmatpush1.msra.mxu0 0.0
    %2068 = vmatprep.subr.mxu0 0.0
    %2069 = vmatpush1.msra.mxu0 0.0
    %2070 = vmatprep.subr.mxu0 0.0
    %2071 = vmatpush1.msra.mxu0 0.0
    %2072 = vmatprep.subr.mxu0 0.0
    %2073 = vmatpush1.msra.mxu0 0.0
    %2074 = vmatprep.subr.mxu0 0.0
    %2075 = vmatpush1.msra.mxu0 0.0
    %2076 = vmatprep.subr.mxu0 0.0
    %2077 = vmatpush1.msra.mxu0 %v569
    %2078 = vmatprep.subr.mxu0 0.0
    %2079 = vmatpush1.msra.mxu0 %v568
    %2080 = vmatprep.subr.mxu0 0.0
    %2081 = vmatpush1.msra.mxu0 %v567
    %2082 = vmatprep.subr.mxu0 0.0
    %2083 = vmatpush1.msra.mxu0 %v566
    %2084 = vmatprep.subr.mxu0 0.0
    %2085 = vmatpush2.msra.mxu0 0.0
    %2086 = vmatprep.subr.mxu0 0.0
    %2087 = vmatpush2.msra.mxu0 0.0
    %2088 = vmatprep.subr.mxu0 0.0
    %2089 = vmatpush2.msra.mxu0 0.0
    %2090 = vmatprep.subr.mxu0 0.0
    %2091 = vmatpush2.msra.mxu0 0.0
    %2092 = vmatprep.subr.mxu0 0.0
    %2093 = vmatpush2.msra.mxu0 0.0
    %2094 = vmatprep.subr.mxu0 0.0
    %2095 = vmatpush2.msra.mxu0 0.0
    %2096 = vmatprep.subr.mxu0 0.0
    %2097 = vmatpush2.msra.mxu0 0.0
    %2098 = vmatprep.subr.mxu0 0.0
    %2099 = vmatpush2.msra.mxu0 0.0
    %2100 = vmatprep.subr.mxu0 0.0
    %2101 = vmatpush2.msra.mxu0 0.0
    %2102 = vmatprep.subr.mxu0 0.0
    %2103 = vmatpush2.msra.mxu0 0.0
    %2104 = vmatprep.subr.mxu0 0.0
    %2105 = vmatpush2.msra.mxu0 0.0
    %2106 = vmatprep.subr.mxu0 0.0
    %2107 = vmatpush2.msra.mxu0 0.0
    %2108 = vmatprep.subr.mxu0 0.0
    %2109 = vmatpush2.msra.mxu0 0.0
    %2110 = vmatprep.subr.mxu0 0.0
    %2111 = vmatpush2.msra.mxu0 0.0
    %2112 = vmatprep.subr.mxu0 0.0
    %2113 = vmatpush2.msra.mxu0 0.0
    %2114 = vmatprep.subr.mxu0 0.0
    %2115 = vmatpush2.msra.mxu0 0.0
    %2116 = vmatprep.mubr.f32.mxu0 0.0
    %2117 = vmatmul.mubr.f32.gmra.mxu0 %v2044
    %v2118 = vpop.f32.mrf.mxu0
    %v2119 = vadd.f32 %v2018, %v2118
    %v2120 = vpop.f32.mrf.mxu0
    %2121 = vmatprep.mubr.f32.mxu0 0.0
    %2122 = vmatmul.mubr.f32.gmra.mxu0 %v2046
    %v2123 = vpop.f32.mrf.mxu0
    %v2124 = vadd.f32 %v2023, %v2123
    %v2125 = vpop.f32.mrf.mxu0
    %2126 = vmatprep.mubr.f32.mxu0 0.0
    %2127 = vmatmul.mubr.f32.gmra.mxu0 %v2048
    %v2128 = vpop.f32.mrf.mxu0
    %v2129 = vadd.f32 %v2028, %v2128
    %v2130 = vpop.f32.mrf.mxu0
    %2131 = vmatprep.mubr.f32.mxu0 0.0
    %2132 = vmatmul.mubr.f32.gmra.mxu0 %v2050
    %v2133 = vpop.f32.mrf.mxu0
    %v2134 = vadd.f32 %v2033, %v2133
    %v2135 = vpop.f32.mrf.mxu0
    %2136 = vdwg.mxu0
    %v2137 = vadd.f32 %v2119, %v582
    %v2138 = vadd.f32 %v2124, %v587
    %v2139 = vadd.f32 %v2129, %v592
    %v2140 = vadd.f32 %v2134, %v597
    %2141 = vst.msk [vmem:[#allocation5 + $0x18] sm:$0xff] %vm480, %v2137
    %2142 = vst.msk [vmem:[#allocation5 + $0x38] sm:$0xff] %vm480, %v2138
    %2143 = vst.msk [vmem:[#allocation5 + $0x58] sm:$0xff] %vm480, %v2139
    %2144 = vst.msk [vmem:[#allocation5 + $0x78] sm:$0xff] %vm480, %v2140
    // Predicated region
    $region30: #{tpu_custom_call.1} parent=1 // pred_check
      _
    $region31: #{tpu_custom_call.1} parent=1 // pred_check_branch
      %2146 = sbr.rel (0) target = $region33
    $region32: #{tpu_custom_call.1} parent=1 // pred_region
      %s2148 = ssub.s32 2048, 2048
      %2149 = vsyncadd [#allocation4], %s2148
      %s2150 = sshll.u32 [#allocation5], 4
      %s2151 = int_to_ptr.vmem [resolvable:$true] %s2150
      %2156 = dma.vmem_to_hbm [thread:$0]  %s2151, 2048, %s6, [#allocation4], 512, 512, 32
    $region33: #{tpu_custom_call.1} parent=1 // pred_fallthru
      _
    // Predicated region
    $region34: #{tpu_custom_call.1} parent=1 // pred_check
      _
    $region35: #{tpu_custom_call.1} parent=1 // pred_check_branch
      %2158 = sbr.rel (0) target = $region37
    $region36: #{tpu_custom_call.1} parent=1 // pred_region
      %2159 = dma.done [#allocation4], 2048
    $region37: #{tpu_custom_call.1} parent=1 // pred_fallthru
      _
    %2160 = vsyncpa [#allocation3], 1
    %2161 = vsyncpa [#allocation4], 1

</llo_original>
